<compile_context>
chip_gen: v6e
topology: v6e:2x2x1
jax: 0.10.0
libtpu: 0.0.40
codegen_flags: <defaults>
</compile_context>

<pallas_src>
import functools

import jax
import jax.numpy as jnp
from jax.experimental import pallas as pl
from jax.experimental.pallas import tpu as pltpu


def _round_up(n, m):
    return ((n + m - 1) // m) * m


def _detect_num_tensorcores():
    """Best-effort TensorCores-per-chip detection (v5e/v6e: 1, v7x: 2)."""
    try:
        info = pltpu.get_tpu_info()
        for name in ("num_cores", "core_count", "num_tensorcores",
                     "tensorcores_per_chip", "cores_per_chip"):
            v = getattr(info, name, None)
            if isinstance(v, int) and v > 0:
                return max(1, min(int(v), 2))
    except Exception:
        pass
    try:
        kind = jax.devices()[0].device_kind.lower()
        if "v7" in kind:
            return 2
    except Exception:
        pass
    return 1


_NUM_TC = _detect_num_tensorcores()


def _autoencoder_kernel(
    x_ref,
    w1_ref, b1_ref,
    w2_ref, b2_ref,
    w34_ref, b34_ref,   # fused latent layer: W34 = W3 @ W4, b34 = b3 @ W4 + b4
    w5_ref, b5_ref,
    w6_ref, b6_ref,
    out_ref,
):
    """Fused forward: 5 MXU matmuls (bf16 in, f32 acc) + f32 bias/ReLU epilogues."""
    cdt = jnp.bfloat16

    # ---- encoder ----
    h = jnp.dot(x_ref[...].astype(cdt), w1_ref[...],
                preferred_element_type=jnp.float32) + b1_ref[...]
    h = jnp.maximum(h, 0.0)
    h = jnp.dot(h.astype(cdt), w2_ref[...],
                preferred_element_type=jnp.float32) + b2_ref[...]
    h = jnp.maximum(h, 0.0)

    # ---- fused latent + first decoder layer (no activation between them) ----
    h = jnp.dot(h.astype(cdt), w34_ref[...],
                preferred_element_type=jnp.float32) + b34_ref[...]
    h = jnp.maximum(h, 0.0)

    # ---- decoder ----
    h = jnp.dot(h.astype(cdt), w5_ref[...],
                preferred_element_type=jnp.float32) + b5_ref[...]
    h = jnp.maximum(h, 0.0)
    y = jnp.dot(h.astype(cdt), w6_ref[...],
                preferred_element_type=jnp.float32) + b6_ref[...]

    out_ref[...] = y.astype(out_ref.dtype)


def prepare_params(params, compute_dtype=jnp.bfloat16):
    """One-time weight preparation (hoisted out of the per-call hot path).

    * Fuse the two latent Linears (no activation between them):
        (h @ W3 + b3) @ W4 + b4 == h @ (W3 @ W4) + (b3 @ W4 + b4)
    * Zero-pad W1's input dim and W6/b6's output dim to multiples of 128
      (lane-dense x load / unmasked output store).
    * Cast weights to bf16 for the MXU; biases stay f32 for the VPU epilogue.

    Returns (flat_arrays, input_dim, output_dim).
    """
    (w1, b1), (w2, b2), (w3, b3), (w4, b4), (w5, b5), (w6, b6) = params
    d_in = w1.shape[0]
    d_out = w6.shape[1]

    w34 = jnp.dot(w3, w4, preferred_element_type=jnp.float32)
    b34 = jnp.dot(b3, w4, preferred_element_type=jnp.float32) + b4

    d_in_pad = _round_up(d_in, 128)
    if d_in_pad != d_in:
        w1 = jnp.pad(w1, ((0, d_in_pad - d_in), (0, 0)))

    d_out_pad = _round_up(d_out, 128)
    if d_out_pad != d_out:
        w6 = jnp.pad(w6, ((0, 0), (0, d_out_pad - d_out)))
        b6 = jnp.pad(b6, ((0, 0), (0, d_out_pad - d_out)))

    weights = [w1, w2, w34, w5, w6]
    biases = [b1, b2, b34, b5, b6]
    flat = []
    for w, b in zip(weights, biases):
        flat.append(w.astype(compute_dtype))
        flat.append(b.astype(jnp.float32))
    return tuple(flat), d_in, d_out


def _choose_batch_tile(batch, num_cores):
    """Fewest grid steps that fill the MXU and give each TensorCore work.

    1 TC (v5e/v6e): one grid step whenever the batch fits a <=512-row tile.
    2 TC (v7x):     exactly two balanced tiles (bt = round_up(cdiv(B,2), 8)).
    Large batches:  512-row tiles (2x the 256-row MXU), well under VMEM limits.
    """
    max_tile = 512
    per_step = -(-batch // num_cores)           # cdiv
    bt = _round_up(max(per_step, 8), 8)
    return min(bt, max_tile)


@functools.partial(jax.jit, static_argnames=("d_out", "num_cores"))
def _forward_impl(x, flat, *, d_out, num_cores):
    B, d_in = x.shape
    d_in_pad = flat[0].shape[0]      # padded W1 rows
    d_out_pad = flat[-2].shape[1]    # padded W6 cols

    # Lane-dense x: pad feature dim to the padded W1 input dim (zeros x zeros = 0).
    if d_in_pad != d_in:
        x = jnp.pad(x, ((0, 0), (0, d_in_pad - d_in)))

    # Core-count-aware batch tiling.
    bt = _choose_batch_tile(B, num_cores)
    B_pad = _round_up(B, bt)
    if B_pad != B:
        x = jnp.pad(x, ((0, B_pad - B), (0, 0)))
    grid = B_pad // bt

    # Weight/bias specs: full array resident in VMEM, same block for every step.
    # TODO(synk): pipeline_mode=pl.Buffered(1) on these constant-index blocks would
    # save ~0.5 MiB of duplicated VMEM buffers; skipped as marginal at these sizes.
    def full_spec(arr):
        return pl.BlockSpec(arr.shape, lambda i: (0, 0))

    in_specs = [pl.BlockSpec((bt, d_in_pad), lambda i: (i, 0))]
    in_specs += [full_spec(a) for a in flat]
    out_spec = pl.BlockSpec((bt, d_out_pad), lambda i: (i, 0))

    out = pl.pallas_call(
        _autoencoder_kernel,
        out_shape=jax.ShapeDtypeStruct((B_pad, d_out_pad), x.dtype),
        grid_spec=pltpu.PrefetchScalarGridSpec(
            num_scalar_prefetch=0,
            grid=(grid,),
            in_specs=in_specs,
            out_specs=out_spec,
        ),
        compiler_params=pltpu.CompilerParams(
            dimension_semantics=("parallel",),
        ),
    )(x, *flat)

    return out[:B, :d_out]


def autoencoder_forward(x, prepared, num_cores=None):
    """x: (B, input_dim) float32. prepared: output of prepare_params(params)."""
    flat, d_in, d_out = prepared
    assert x.shape[1] == d_in, (x.shape, d_in)
    if num_cores is None:
        num_cores = _NUM_TC
    return _forward_impl(x, flat, d_out=d_out, num_cores=num_cores)


def init_params(key, input_dim, latent_dim):
    """Deterministic init matching PyTorch layer shapes (weights stored transposed)."""
    dims = [
        (input_dim, 256),
        (256, 128),
        (128, latent_dim),
        (latent_dim, 128),
        (128, 256),
        (256, input_dim),
    ]
    params = []
    for (fan_in, fan_out) in dims:
        key, kw, kb = jax.random.split(key, 3)
        bound = 1.0 / jnp.sqrt(fan_in)
        w = jax.random.uniform(kw, (fan_in, fan_out), jnp.float32, -bound, bound)
        b = jax.random.uniform(kb, (1, fan_out), jnp.float32, -bound, bound)
        params.append((w, b))
    return params


def reference_forward(x, params):
    """Plain-JAX f32 reference (original, un-fused semantics)."""
    h = x
    for idx, (w, b) in enumerate(params):
        h = h @ w + b
        # ReLU after layers 0,1 (encoder hidden) and 3,4 (decoder hidden)
        if idx in (0, 1, 3, 4):
            h = jnp.maximum(h, 0.0)
    return h


if __name__ == "__main__":
    key = jax.random.PRNGKey(0)
    input_dim = 64
    latent_dim = 32
    batch = 200  # not a multiple of 8/128 -> exercises padding + tiling paths

    kx, kp = jax.random.split(key)
    x = jax.random.normal(kx, (batch, input_dim), jnp.float32)
    params = init_params(kp, input_dim, latent_dim)

    prepared = prepare_params(params)        # one-time weight prep (hoisted)
    out = autoencoder_forward(x, prepared)
    out = jax.block_until_ready(out)

    ref = reference_forward(x, params)
    assert out.shape == (batch, input_dim), out.shape
    # bf16 matmul inputs (f32 accumulation) + latent fusion => small fp differences
    # vs. the pure-f32 reference; outputs are O(0.05), errors are O(1e-3).
    assert jnp.allclose(out, ref, atol=5e-2, rtol=5e-2), "mismatch vs reference"

    print("KERNEL_OK")
</pallas_src>

<mosaic_0001>
module attributes {stable_mosaic.version = 11 : i64} {
  func.func @_autoencoder_kernel(%arg0: i32, %arg1: memref<200x128xf32, #tpu.memory_space<vmem>>, %arg2: memref<128x256xbf16, #tpu.memory_space<vmem>>, %arg3: memref<1x256xf32, #tpu.memory_space<vmem>>, %arg4: memref<256x128xbf16, #tpu.memory_space<vmem>>, %arg5: memref<1x128xf32, #tpu.memory_space<vmem>>, %arg6: memref<128x128xbf16, #tpu.memory_space<vmem>>, %arg7: memref<1x128xf32, #tpu.memory_space<vmem>>, %arg8: memref<128x256xbf16, #tpu.memory_space<vmem>>, %arg9: memref<1x256xf32, #tpu.memory_space<vmem>>, %arg10: memref<256x128xbf16, #tpu.memory_space<vmem>>, %arg11: memref<1x128xf32, #tpu.memory_space<vmem>>, %arg12: memref<200x128xf32, #tpu.memory_space<vmem>>) attributes {dimension_semantics = [#tpu.dimension_semantics<parallel>], iteration_bounds = array<i64: 1>, scalar_prefetch = 0 : i64, scratch_operands = 0 : i64, tpu.core_type = #tpu.core_type<tc>, window_params = [{transform_indices = @transform_0, window_bounds = array<i64: 200, 128>}, {pipeline_mode = #tpu.pipeline_mode<synchronous>, transform_indices = @transform_1, window_bounds = array<i64: 128, 256>}, {pipeline_mode = #tpu.pipeline_mode<synchronous>, transform_indices = @transform_2, window_bounds = array<i64: 1, 256>}, {pipeline_mode = #tpu.pipeline_mode<synchronous>, transform_indices = @transform_3, window_bounds = array<i64: 256, 128>}, {pipeline_mode = #tpu.pipeline_mode<synchronous>, transform_indices = @transform_4, window_bounds = array<i64: 1, 128>}, {pipeline_mode = #tpu.pipeline_mode<synchronous>, transform_indices = @transform_5, window_bounds = array<i64: 128, 128>}, {pipeline_mode = #tpu.pipeline_mode<synchronous>, transform_indices = @transform_6, window_bounds = array<i64: 1, 128>}, {pipeline_mode = #tpu.pipeline_mode<synchronous>, transform_indices = @transform_7, window_bounds = array<i64: 128, 256>}, {pipeline_mode = #tpu.pipeline_mode<synchronous>, transform_indices = @transform_8, window_bounds = array<i64: 1, 256>}, {pipeline_mode = #tpu.pipeline_mode<synchronous>, transform_indices = @transform_9, window_bounds = array<i64: 256, 128>}, {pipeline_mode = #tpu.pipeline_mode<synchronous>, transform_indices = @transform_10, window_bounds = array<i64: 1, 128>}, {transform_indices = @transform_11, window_bounds = array<i64: 200, 128>}]} {
    %c0 = arith.constant 0 : index
    %c0_0 = arith.constant 0 : index
    %0 = vector.load %arg1[%c0, %c0_0] : memref<200x128xf32, #tpu.memory_space<vmem>>, vector<200x128xf32>
    %1 = arith.truncf %0 : vector<200x128xf32> to vector<200x128xbf16>
    %c0_1 = arith.constant 0 : index
    %c0_2 = arith.constant 0 : index
    %2 = vector.load %arg2[%c0_1, %c0_2] : memref<128x256xbf16, #tpu.memory_space<vmem>>, vector<128x256xbf16>
    %cst = arith.constant dense<0.000000e+00> : vector<200x256xf32>
    %3 = tpu.matmul %1, %2, %cst {dimension_numbers = #tpu.dot_dimension_numbers<[1], [0], [0], [1], [0, 0, 1, 1], [], []>} : vector<200x128xbf16>, vector<128x256xbf16>, vector<200x256xf32> -> vector<200x256xf32>
    %c0_3 = arith.constant 0 : index
    %c0_4 = arith.constant 0 : index
    %4 = vector.load %arg3[%c0_3, %c0_4] : memref<1x256xf32, #tpu.memory_space<vmem>>, vector<1x256xf32>
    %5 = vector.broadcast %4 : vector<1x256xf32> to vector<200x256xf32>
    %6 = arith.addf %3, %5 : vector<200x256xf32>
    %cst_5 = arith.constant 0.000000e+00 : f32
    %7 = vector.broadcast %cst_5 : f32 to vector<200x256xf32>
    %8 = arith.maximumf %6, %7 : vector<200x256xf32>
    %9 = arith.truncf %8 : vector<200x256xf32> to vector<200x256xbf16>
    %c0_6 = arith.constant 0 : index
    %c0_7 = arith.constant 0 : index
    %10 = vector.load %arg4[%c0_6, %c0_7] : memref<256x128xbf16, #tpu.memory_space<vmem>>, vector<256x128xbf16>
    %cst_8 = arith.constant dense<0.000000e+00> : vector<200x128xf32>
    %11 = tpu.matmul %9, %10, %cst_8 {dimension_numbers = #tpu.dot_dimension_numbers<[1], [0], [0], [1], [0, 0, 1, 1], [], []>} : vector<200x256xbf16>, vector<256x128xbf16>, vector<200x128xf32> -> vector<200x128xf32>
    %c0_9 = arith.constant 0 : index
    %c0_10 = arith.constant 0 : index
    %12 = vector.load %arg5[%c0_9, %c0_10] : memref<1x128xf32, #tpu.memory_space<vmem>>, vector<1x128xf32>
    %13 = vector.broadcast %12 : vector<1x128xf32> to vector<200x128xf32>
    %14 = arith.addf %11, %13 : vector<200x128xf32>
    %cst_11 = arith.constant 0.000000e+00 : f32
    %15 = vector.broadcast %cst_11 : f32 to vector<200x128xf32>
    %16 = arith.maximumf %14, %15 : vector<200x128xf32>
    %17 = arith.truncf %16 : vector<200x128xf32> to vector<200x128xbf16>
    %c0_12 = arith.constant 0 : index
    %c0_13 = arith.constant 0 : index
    %18 = vector.load %arg6[%c0_12, %c0_13] : memref<128x128xbf16, #tpu.memory_space<vmem>>, vector<128x128xbf16>
    %cst_14 = arith.constant dense<0.000000e+00> : vector<200x128xf32>
    %19 = tpu.matmul %17, %18, %cst_14 {dimension_numbers = #tpu.dot_dimension_numbers<[1], [0], [0], [1], [0, 0, 1, 1], [], []>} : vector<200x128xbf16>, vector<128x128xbf16>, vector<200x128xf32> -> vector<200x128xf32>
    %c0_15 = arith.constant 0 : index
    %c0_16 = arith.constant 0 : index
    %20 = vector.load %arg7[%c0_15, %c0_16] : memref<1x128xf32, #tpu.memory_space<vmem>>, vector<1x128xf32>
    %21 = vector.broadcast %20 : vector<1x128xf32> to vector<200x128xf32>
    %22 = arith.addf %19, %21 : vector<200x128xf32>
    %cst_17 = arith.constant 0.000000e+00 : f32
    %23 = vector.broadcast %cst_17 : f32 to vector<200x128xf32>
    %24 = arith.maximumf %22, %23 : vector<200x128xf32>
    %25 = arith.truncf %24 : vector<200x128xf32> to vector<200x128xbf16>
    %c0_18 = arith.constant 0 : index
    %c0_19 = arith.constant 0 : index
    %26 = vector.load %arg8[%c0_18, %c0_19] : memref<128x256xbf16, #tpu.memory_space<vmem>>, vector<128x256xbf16>
    %cst_20 = arith.constant dense<0.000000e+00> : vector<200x256xf32>
    %27 = tpu.matmul %25, %26, %cst_20 {dimension_numbers = #tpu.dot_dimension_numbers<[1], [0], [0], [1], [0, 0, 1, 1], [], []>} : vector<200x128xbf16>, vector<128x256xbf16>, vector<200x256xf32> -> vector<200x256xf32>
    %c0_21 = arith.constant 0 : index
    %c0_22 = arith.constant 0 : index
    %28 = vector.load %arg9[%c0_21, %c0_22] : memref<1x256xf32, #tpu.memory_space<vmem>>, vector<1x256xf32>
    %29 = vector.broadcast %28 : vector<1x256xf32> to vector<200x256xf32>
    %30 = arith.addf %27, %29 : vector<200x256xf32>
    %cst_23 = arith.constant 0.000000e+00 : f32
    %31 = vector.broadcast %cst_23 : f32 to vector<200x256xf32>
    %32 = arith.maximumf %30, %31 : vector<200x256xf32>
    %33 = arith.truncf %32 : vector<200x256xf32> to vector<200x256xbf16>
    %c0_24 = arith.constant 0 : index
    %c0_25 = arith.constant 0 : index
    %34 = vector.load %arg10[%c0_24, %c0_25] : memref<256x128xbf16, #tpu.memory_space<vmem>>, vector<256x128xbf16>
    %cst_26 = arith.constant dense<0.000000e+00> : vector<200x128xf32>
    %35 = tpu.matmul %33, %34, %cst_26 {dimension_numbers = #tpu.dot_dimension_numbers<[1], [0], [0], [1], [0, 0, 1, 1], [], []>} : vector<200x256xbf16>, vector<256x128xbf16>, vector<200x128xf32> -> vector<200x128xf32>
    %c0_27 = arith.constant 0 : index
    %c0_28 = arith.constant 0 : index
    %36 = vector.load %arg11[%c0_27, %c0_28] : memref<1x128xf32, #tpu.memory_space<vmem>>, vector<1x128xf32>
    %37 = vector.broadcast %36 : vector<1x128xf32> to vector<200x128xf32>
    %38 = arith.addf %35, %37 : vector<200x128xf32>
    %c0_29 = arith.constant 0 : index
    %c0_30 = arith.constant 0 : index
    %39 = vector.load %arg12[%c0_29, %c0_30] : memref<200x128xf32, #tpu.memory_space<vmem>>, vector<200x128xf32>
    tpu.vector_store %arg12[%c0_29, %c0_30], %38 {strides = array<i32>} : memref<200x128xf32, #tpu.memory_space<vmem>>, vector<200x128xf32>,
    return
  }
  func.func @transform_0(%arg0: i32) -> (i32, i32) {
    %c0_i32 = arith.constant 0 : i32
    %c0_i32_0 = arith.constant 0 : i32
    return %arg0, %c0_i32 : i32, i32
  }
  func.func @transform_1(%arg0: i32) -> (i32, i32) {
    %c0_i32 = arith.constant 0 : i32
    %c0_i32_0 = arith.constant 0 : i32
    %c0_i32_1 = arith.constant 0 : i32
    return %c0_i32, %c0_i32_0 : i32, i32
  }
  func.func @transform_2(%arg0: i32) -> (i32, i32) {
    %c0_i32 = arith.constant 0 : i32
    %c0_i32_0 = arith.constant 0 : i32
    %c0_i32_1 = arith.constant 0 : i32
    return %c0_i32, %c0_i32_0 : i32, i32
  }
  func.func @transform_3(%arg0: i32) -> (i32, i32) {
    %c0_i32 = arith.constant 0 : i32
    %c0_i32_0 = arith.constant 0 : i32
    %c0_i32_1 = arith.constant 0 : i32
    return %c0_i32, %c0_i32_0 : i32, i32
  }
  func.func @transform_4(%arg0: i32) -> (i32, i32) {
    %c0_i32 = arith.constant 0 : i32
    %c0_i32_0 = arith.constant 0 : i32
    %c0_i32_1 = arith.constant 0 : i32
    return %c0_i32, %c0_i32_0 : i32, i32
  }
  func.func @transform_5(%arg0: i32) -> (i32, i32) {
    %c0_i32 = arith.constant 0 : i32
    %c0_i32_0 = arith.constant 0 : i32
    %c0_i32_1 = arith.constant 0 : i32
    return %c0_i32, %c0_i32_0 : i32, i32
  }
  func.func @transform_6(%arg0: i32) -> (i32, i32) {
    %c0_i32 = arith.constant 0 : i32
    %c0_i32_0 = arith.constant 0 : i32
    %c0_i32_1 = arith.constant 0 : i32
    return %c0_i32, %c0_i32_0 : i32, i32
  }
  func.func @transform_7(%arg0: i32) -> (i32, i32) {
    %c0_i32 = arith.constant 0 : i32
    %c0_i32_0 = arith.constant 0 : i32
    %c0_i32_1 = arith.constant 0 : i32
    return %c0_i32, %c0_i32_0 : i32, i32
  }
  func.func @transform_8(%arg0: i32) -> (i32, i32) {
    %c0_i32 = arith.constant 0 : i32
    %c0_i32_0 = arith.constant 0 : i32
    %c0_i32_1 = arith.constant 0 : i32
    return %c0_i32, %c0_i32_0 : i32, i32
  }
  func.func @transform_9(%arg0: i32) -> (i32, i32) {
    %c0_i32 = arith.constant 0 : i32
    %c0_i32_0 = arith.constant 0 : i32
    %c0_i32_1 = arith.constant 0 : i32
    return %c0_i32, %c0_i32_0 : i32, i32
  }
  func.func @transform_10(%arg0: i32) -> (i32, i32) {
    %c0_i32 = arith.constant 0 : i32
    %c0_i32_0 = arith.constant 0 : i32
    %c0_i32_1 = arith.constant 0 : i32
    return %c0_i32, %c0_i32_0 : i32, i32
  }
  func.func @transform_11(%arg0: i32) -> (i32, i32) {
    %c0_i32 = arith.constant 0 : i32
    %c0_i32_0 = arith.constant 0 : i32
    return %arg0, %c0_i32 : i32, i32
  }
}

</mosaic_0001>

<llo_original>
// kernel: _forward_impl.1
$region0: #{_forward_impl.1}
  #allocation0 [shape = 'u32[]', space=smem, size = 0x4, offset = 0x4, fixed_abs, tag = 'smem constant byte address 0x4 - core index']
  #allocation1 [shape = 'u32[144,128]{1,0:T(1,128)}', space=vmem, size = 0x12000, scoped, tag = 'internal scratch']
  %s0 = inlined_call_operand.vmem [shape: f32[200,128], index: 0, kind: input, shape index: {}]
  %s1 = inlined_call_operand.vmem [shape: bf16[128,256], index: 1, kind: input, shape index: {}]
  %s2 = inlined_call_operand.vmem [shape: f32[1,256], index: 2, kind: input, shape index: {}]
  %s3 = inlined_call_operand.vmem [shape: bf16[256,128], index: 3, kind: input, shape index: {}]
  %s4 = inlined_call_operand.vmem [shape: f32[1,128], index: 4, kind: input, shape index: {}]
  %s5 = inlined_call_operand.vmem [shape: bf16[128,128], index: 5, kind: input, shape index: {}]
  %s6 = inlined_call_operand.vmem [shape: f32[1,128], index: 6, kind: input, shape index: {}]
  %s7 = inlined_call_operand.vmem [shape: bf16[128,256], index: 7, kind: input, shape index: {}]
  %s8 = inlined_call_operand.vmem [shape: f32[1,256], index: 8, kind: input, shape index: {}]
  %s9 = inlined_call_operand.vmem [shape: bf16[256,128], index: 9, kind: input, shape index: {}]
  %s10 = inlined_call_operand.vmem [shape: f32[1,128], index: 10, kind: input, shape index: {}]
  %s11 = inlined_call_operand.vmem [shape: f32[200,128], index: 11, kind: output, shape index: {}]
  %s12 = sld [smem:[#allocation0]]
  $region54: #{_forward_impl.1} parent=0
    _
  %s14 = ssub.s32 1, %s12
  %s15 = scalar_select 0, %s14, %s12
  // Predicated region
  $region2: #{_forward_impl.1} parent=0 // pred_check
    _
  $region3: #{_forward_impl.1} parent=0 // pred_check_branch
    %17 = sbr.rel (0) target = $region5
  $region4: #{_forward_impl.1} parent=0 // pred_region
    _
  $region5: #{_forward_impl.1} parent=0 // pred_fallthru
    _
  // Predicated region
  $region6: #{_forward_impl.1} parent=0 // pred_check
    _
  $region7: #{_forward_impl.1} parent=0 // pred_check_branch
    %19 = sbr.rel (0) target = $region9
  $region8: #{_forward_impl.1} parent=0 // pred_region
    _
  $region9: #{_forward_impl.1} parent=0 // pred_fallthru
    _
  // Predicated region
  $region10: #{_forward_impl.1} parent=0 // pred_check
    _
  $region11: #{_forward_impl.1} parent=0 // pred_check_branch
    %21 = sbr.rel (0) target = $region13
  $region12: #{_forward_impl.1} parent=0 // pred_region
    _
  $region13: #{_forward_impl.1} parent=0 // pred_fallthru
    _
  // Predicated region
  $region14: #{_forward_impl.1} parent=0 // pred_check
    _
  $region15: #{_forward_impl.1} parent=0 // pred_check_branch
    %23 = sbr.rel (0) target = $region17
  $region16: #{_forward_impl.1} parent=0 // pred_region
    _
  $region17: #{_forward_impl.1} parent=0 // pred_fallthru
    _
  // Predicated region
  $region18: #{_forward_impl.1} parent=0 // pred_check
    _
  $region19: #{_forward_impl.1} parent=0 // pred_check_branch
    %25 = sbr.rel (0) target = $region21
  $region20: #{_forward_impl.1} parent=0 // pred_region
    _
  $region21: #{_forward_impl.1} parent=0 // pred_fallthru
    _
  // Predicated region
  $region22: #{_forward_impl.1} parent=0 // pred_check
    _
  $region23: #{_forward_impl.1} parent=0 // pred_check_branch
    %27 = sbr.rel (0) target = $region25
  $region24: #{_forward_impl.1} parent=0 // pred_region
    _
  $region25: #{_forward_impl.1} parent=0 // pred_fallthru
    _
  // Predicated region
  $region26: #{_forward_impl.1} parent=0 // pred_check
    _
  $region27: #{_forward_impl.1} parent=0 // pred_check_branch
    %29 = sbr.rel (0) target = $region29
  $region28: #{_forward_impl.1} parent=0 // pred_region
    _
  $region29: #{_forward_impl.1} parent=0 // pred_fallthru
    _
  // Predicated region
  $region30: #{_forward_impl.1} parent=0 // pred_check
    _
  $region31: #{_forward_impl.1} parent=0 // pred_check_branch
    %31 = sbr.rel (0) target = $region33
  $region32: #{_forward_impl.1} parent=0 // pred_region
    _
  $region33: #{_forward_impl.1} parent=0 // pred_fallthru
    _
  // Predicated region
  $region34: #{_forward_impl.1} parent=0 // pred_check
    _
  $region35: #{_forward_impl.1} parent=0 // pred_check_branch
    %33 = sbr.rel (0) target = $region37
  $region36: #{_forward_impl.1} parent=0 // pred_region
    _
  $region37: #{_forward_impl.1} parent=0 // pred_fallthru
    _
  // Predicated region
  $region38: #{_forward_impl.1} parent=0 // pred_check
    _
  $region39: #{_forward_impl.1} parent=0 // pred_check_branch
    %35 = sbr.rel (0) target = $region41
  $region40: #{_forward_impl.1} parent=0 // pred_region
    _
  $region41: #{_forward_impl.1} parent=0 // pred_fallthru
    _
  // Predicated region
  $region42: #{_forward_impl.1} parent=0 // pred_check
    _
  $region43: #{_forward_impl.1} parent=0 // pred_check_branch
    %37 = sbr.rel (0) target = $region45
  $region44: #{_forward_impl.1} parent=0 // pred_region
    _
  $region45: #{_forward_impl.1} parent=0 // pred_fallthru
    _
  %v39 = vld [vmem:[%s0] sm:$0xff]
  %v40 = vld [vmem:[%s0 + $0x8] sm:$0xff]
  %v41 = vld [vmem:[%s0 + $0x10] sm:$0xff]
  %v42 = vld [vmem:[%s0 + $0x18] sm:$0xff]
  %v43 = vld [vmem:[%s0 + $0x20] sm:$0xff]
  %v44 = vld [vmem:[%s0 + $0x28] sm:$0xff]
  %v45 = vld [vmem:[%s0 + $0x30] sm:$0xff]
  %v46 = vld [vmem:[%s0 + $0x38] sm:$0xff]
  %v47 = vld [vmem:[%s0 + $0x40] sm:$0xff]
  %v48 = vld [vmem:[%s0 + $0x48] sm:$0xff]
  %v49 = vld [vmem:[%s0 + $0x50] sm:$0xff]
  %v50 = vld [vmem:[%s0 + $0x58] sm:$0xff]
  %v51 = vld [vmem:[%s0 + $0x60] sm:$0xff]
  %v52 = vld [vmem:[%s0 + $0x68] sm:$0xff]
  %v53 = vld [vmem:[%s0 + $0x70] sm:$0xff]
  %v54 = vld [vmem:[%s0 + $0x78] sm:$0xff]
  %v55 = vld [vmem:[%s0 + $0x80] sm:$0xff]
  %v56 = vld [vmem:[%s0 + $0x88] sm:$0xff]
  %v57 = vld [vmem:[%s0 + $0x90] sm:$0xff]
  %v58 = vld [vmem:[%s0 + $0x98] sm:$0xff]
  %v59 = vld [vmem:[%s0 + $0xa0] sm:$0xff]
  %v60 = vld [vmem:[%s0 + $0xa8] sm:$0xff]
  %v61 = vld [vmem:[%s0 + $0xb0] sm:$0xff]
  %v62 = vld [vmem:[%s0 + $0xb8] sm:$0xff]
  %v63 = vld [vmem:[%s0 + $0xc0] sm:$0xff]
  %v64 = vpack.c.bf16 %v40, %v39
  %v65 = vpack.c.bf16 %v42, %v41
  %v66 = vpack.c.bf16 %v44, %v43
  %v67 = vpack.c.bf16 %v46, %v45
  %v68 = vpack.c.bf16 %v48, %v47
  %v69 = vpack.c.bf16 %v50, %v49
  %v70 = vpack.c.bf16 %v52, %v51
  %v71 = vpack.c.bf16 %v54, %v53
  %v72 = vpack.c.bf16 %v56, %v55
  %v73 = vpack.c.bf16 %v58, %v57
  %v74 = vpack.c.bf16 %v60, %v59
  %v75 = vpack.c.bf16 %v62, %v61
  %v76 = vpack.c.bf16 %v63, %v63
  %v77 = vld [vmem:[%s1] sm:$0xff]
  %v78 = vld [vmem:[%s1 + $0x8] sm:$0xff]
  %v79 = vld [vmem:[%s1 + $0x10] sm:$0xff]
  %v80 = vld [vmem:[%s1 + $0x18] sm:$0xff]
  %v81 = vld [vmem:[%s1 + $0x20] sm:$0xff]
  %v82 = vld [vmem:[%s1 + $0x28] sm:$0xff]
  %v83 = vld [vmem:[%s1 + $0x30] sm:$0xff]
  %v84 = vld [vmem:[%s1 + $0x38] sm:$0xff]
  %v85 = vld [vmem:[%s1 + $0x40] sm:$0xff]
  %v86 = vld [vmem:[%s1 + $0x48] sm:$0xff]
  %v87 = vld [vmem:[%s1 + $0x50] sm:$0xff]
  %v88 = vld [vmem:[%s1 + $0x58] sm:$0xff]
  %v89 = vld [vmem:[%s1 + $0x60] sm:$0xff]
  %v90 = vld [vmem:[%s1 + $0x68] sm:$0xff]
  %v91 = vld [vmem:[%s1 + $0x70] sm:$0xff]
  %v92 = vld [vmem:[%s1 + $0x78] sm:$0xff]
  %v93 = vld [vmem:[%s2] sm:$0x3]
  %v95 = vlaneseq
  %v96 = vshrl.u32 %v95, 7
  %v97 = vsub.s32 0, %v96
  %v98 = vrot.slane %v93, %v97
  %v99 = vlaneseq
  %v100 = vshrl.u32 %v99, 7
  %v101 = vsub.s32 1, %v100
  %v102 = vrot.slane %v93, %v101
  %v121 = vunpack.c.l.b16 %v77
  %v122 = vunpack.c.h.b16 %v77
  %v123 = vunpack.c.l.b16 %v78
  %v124 = vunpack.c.h.b16 %v78
  %v125 = vunpack.c.l.b16 %v79
  %v126 = vunpack.c.h.b16 %v79
  %v127 = vunpack.c.l.b16 %v80
  %v128 = vunpack.c.h.b16 %v80
  %v129 = vunpack.c.l.b16 %v81
  %v130 = vunpack.c.h.b16 %v81
  %v131 = vunpack.c.l.b16 %v82
  %v132 = vunpack.c.h.b16 %v82
  %v133 = vunpack.c.l.b16 %v83
  %v134 = vunpack.c.h.b16 %v83
  %v135 = vunpack.c.l.b16 %v84
  %v136 = vunpack.c.h.b16 %v84
  %v137 = vunpack.c.l.b16 %v85
  %v138 = vunpack.c.h.b16 %v85
  %v139 = vunpack.c.l.b16 %v86
  %v140 = vunpack.c.h.b16 %v86
  %v141 = vunpack.c.l.b16 %v87
  %v142 = vunpack.c.h.b16 %v87
  %v143 = vunpack.c.l.b16 %v88
  %v144 = vunpack.c.h.b16 %v88
  %v145 = vunpack.c.l.b16 %v89
  %v146 = vunpack.c.h.b16 %v89
  %v147 = vunpack.c.l.b16 %v90
  %v148 = vunpack.c.h.b16 %v90
  %v149 = vunpack.c.l.b16 %v91
  %v150 = vunpack.c.h.b16 %v91
  %v151 = vunpack.c.l.b16 %v92
  %v152 = vunpack.c.h.b16 %v92
  %v153 = vpack.c.b16 %v123, %v121
  %v154 = vpack.c.b16 %v124, %v122
  %v155 = vpack.c.b16 %v127, %v125
  %v156 = vpack.c.b16 %v128, %v126
  %v157 = vpack.c.b16 %v131, %v129
  %v158 = vpack.c.b16 %v132, %v130
  %v159 = vpack.c.b16 %v135, %v133
  %v160 = vpack.c.b16 %v136, %v134
  %v161 = vpack.c.b16 %v139, %v137
  %v162 = vpack.c.b16 %v140, %v138
  %v163 = vpack.c.b16 %v143, %v141
  %v164 = vpack.c.b16 %v144, %v142
  %v165 = vpack.c.b16 %v147, %v145
  %v166 = vpack.c.b16 %v148, %v146
  %v167 = vpack.c.b16 %v151, %v149
  %v168 = vpack.c.b16 %v152, %v150
  %185 = vmatprep.subr.bf16.mxu0 %v168
  %186 = vmatpush1.bf16.msra.mxu0 %v167
  %187 = vmatprep.subr.bf16.mxu0 %v166
  %188 = vmatpush1.bf16.msra.mxu0 %v165
  %189 = vmatprep.subr.bf16.mxu0 %v164
  %190 = vmatpush1.bf16.msra.mxu0 %v163
  %191 = vmatprep.subr.bf16.mxu0 %v162
  %192 = vmatpush1.bf16.msra.mxu0 %v161
  %193 = vmatprep.subr.bf16.mxu0 %v160
  %194 = vmatpush1.bf16.msra.mxu0 %v159
  %195 = vmatprep.subr.bf16.mxu0 %v158
  %196 = vmatpush1.bf16.msra.mxu0 %v157
  %197 = vmatprep.subr.bf16.mxu0 %v156
  %198 = vmatpush1.bf16.msra.mxu0 %v155
  %199 = vmatprep.subr.bf16.mxu0 %v154
  %200 = vmatpush1.bf16.msra.mxu0 %v153
  %201 = vmatprep.subr.bf16.mxu0 0
  %202 = vmatpush2.bf16.msra.mxu0 0
  %203 = vmatprep.subr.bf16.mxu0 0
  %204 = vmatpush2.bf16.msra.mxu0 0
  %205 = vmatprep.subr.bf16.mxu0 0
  %206 = vmatpush2.bf16.msra.mxu0 0
  %207 = vmatprep.subr.bf16.mxu0 0
  %208 = vmatpush2.bf16.msra.mxu0 0
  %209 = vmatprep.subr.bf16.mxu0 0
  %210 = vmatpush2.bf16.msra.mxu0 0
  %211 = vmatprep.subr.bf16.mxu0 0
  %212 = vmatpush2.bf16.msra.mxu0 0
  %213 = vmatprep.subr.bf16.mxu0 0
  %214 = vmatpush2.bf16.msra.mxu0 0
  %215 = vmatprep.subr.bf16.mxu0 0
  %216 = vmatpush2.bf16.msra.mxu0 0
  %217 = vmatprep.mubr.bf16.mxu0 0
  %218 = vmatmul.mubr.bf16.gmra.mxu0 %v64
  %v219 = vpop.f32.mrf.mxu0
  %v220 = vadd.f32 %v98, %v219
  %v221 = vpop.f32.mrf.mxu0
  %v222 = vadd.f32 %v102, %v221
  %v223 = vpop.f32.mrf.mxu0
  %v224 = vadd.f32 %v98, %v223
  %v225 = vpop.f32.mrf.mxu0
  %v226 = vadd.f32 %v102, %v225
  %227 = vmatprep.mubr.bf16.mxu0 0
  %228 = vmatmul.mubr.bf16.gmra.mxu0 %v65
  %v229 = vpop.f32.mrf.mxu0
  %v230 = vadd.f32 %v98, %v229
  %v231 = vpop.f32.mrf.mxu0
  %v232 = vadd.f32 %v102, %v231
  %v233 = vpop.f32.mrf.mxu0
  %v234 = vadd.f32 %v98, %v233
  %v235 = vpop.f32.mrf.mxu0
  %v236 = vadd.f32 %v102, %v235
  %237 = vmatprep.mubr.bf16.mxu0 0
  %238 = vmatmul.mubr.bf16.gmra.mxu0 %v66
  %v239 = vpop.f32.mrf.mxu0
  %v240 = vadd.f32 %v98, %v239
  %v241 = vpop.f32.mrf.mxu0
  %v242 = vadd.f32 %v102, %v241
  %v243 = vpop.f32.mrf.mxu0
  %v244 = vadd.f32 %v98, %v243
  %v245 = vpop.f32.mrf.mxu0
  %v246 = vadd.f32 %v102, %v245
  %247 = vmatprep.mubr.bf16.mxu0 0
  %248 = vmatmul.mubr.bf16.gmra.mxu0 %v67
  %v249 = vpop.f32.mrf.mxu0
  %v250 = vadd.f32 %v98, %v249
  %v251 = vpop.f32.mrf.mxu0
  %v252 = vadd.f32 %v102, %v251
  %v253 = vpop.f32.mrf.mxu0
  %v254 = vadd.f32 %v98, %v253
  %v255 = vpop.f32.mrf.mxu0
  %v256 = vadd.f32 %v102, %v255
  %257 = vmatprep.mubr.bf16.mxu0 0
  %258 = vmatmul.mubr.bf16.gmra.mxu0 %v68
  %v259 = vpop.f32.mrf.mxu0
  %v260 = vadd.f32 %v98, %v259
  %v261 = vpop.f32.mrf.mxu0
  %v262 = vadd.f32 %v102, %v261
  %v263 = vpop.f32.mrf.mxu0
  %v264 = vadd.f32 %v98, %v263
  %v265 = vpop.f32.mrf.mxu0
  %v266 = vadd.f32 %v102, %v265
  %267 = vmatprep.mubr.bf16.mxu0 0
  %268 = vmatmul.mubr.bf16.gmra.mxu0 %v69
  %v269 = vpop.f32.mrf.mxu0
  %v270 = vadd.f32 %v98, %v269
  %v271 = vpop.f32.mrf.mxu0
  %v272 = vadd.f32 %v102, %v271
  %v273 = vpop.f32.mrf.mxu0
  %v274 = vadd.f32 %v98, %v273
  %v275 = vpop.f32.mrf.mxu0
  %v276 = vadd.f32 %v102, %v275
  %277 = vmatprep.mubr.bf16.mxu0 0
  %278 = vmatmul.mubr.bf16.gmra.mxu0 %v70
  %v279 = vpop.f32.mrf.mxu0
  %v280 = vadd.f32 %v98, %v279
  %v281 = vpop.f32.mrf.mxu0
  %v282 = vadd.f32 %v102, %v281
  %v283 = vpop.f32.mrf.mxu0
  %v284 = vadd.f32 %v98, %v283
  %v285 = vpop.f32.mrf.mxu0
  %v286 = vadd.f32 %v102, %v285
  %287 = vmatprep.mubr.bf16.mxu0 0
  %288 = vmatmul.mubr.bf16.gmra.mxu0 %v71
  %v289 = vpop.f32.mrf.mxu0
  %v290 = vadd.f32 %v98, %v289
  %v291 = vpop.f32.mrf.mxu0
  %v292 = vadd.f32 %v102, %v291
  %v293 = vpop.f32.mrf.mxu0
  %v294 = vadd.f32 %v98, %v293
  %v295 = vpop.f32.mrf.mxu0
  %v296 = vadd.f32 %v102, %v295
  %297 = vmatprep.mubr.bf16.mxu0 0
  %298 = vmatmul.mubr.bf16.gmra.mxu0 %v72
  %v299 = vpop.f32.mrf.mxu0
  %v300 = vadd.f32 %v98, %v299
  %v301 = vpop.f32.mrf.mxu0
  %v302 = vadd.f32 %v102, %v301
  %v303 = vpop.f32.mrf.mxu0
  %v304 = vadd.f32 %v98, %v303
  %v305 = vpop.f32.mrf.mxu0
  %v306 = vadd.f32 %v102, %v305
  %307 = vmatprep.mubr.bf16.mxu0 0
  %308 = vmatmul.mubr.bf16.gmra.mxu0 %v73
  %v309 = vpop.f32.mrf.mxu0
  %v310 = vadd.f32 %v98, %v309
  %v311 = vpop.f32.mrf.mxu0
  %v312 = vadd.f32 %v102, %v311
  %v313 = vpop.f32.mrf.mxu0
  %v314 = vadd.f32 %v98, %v313
  %v315 = vpop.f32.mrf.mxu0
  %v316 = vadd.f32 %v102, %v315
  %317 = vmatprep.mubr.bf16.mxu0 0
  %318 = vmatmul.mubr.bf16.gmra.mxu0 %v74
  %v319 = vpop.f32.mrf.mxu0
  %v320 = vadd.f32 %v98, %v319
  %v321 = vpop.f32.mrf.mxu0
  %v322 = vadd.f32 %v102, %v321
  %v323 = vpop.f32.mrf.mxu0
  %v324 = vadd.f32 %v98, %v323
  %v325 = vpop.f32.mrf.mxu0
  %v326 = vadd.f32 %v102, %v325
  %327 = vmatprep.mubr.bf16.mxu0 0
  %328 = vmatmul.mubr.bf16.gmra.mxu0 %v75
  %v329 = vpop.f32.mrf.mxu0
  %v330 = vadd.f32 %v98, %v329
  %v331 = vpop.f32.mrf.mxu0
  %v332 = vadd.f32 %v102, %v331
  %v333 = vpop.f32.mrf.mxu0
  %v334 = vadd.f32 %v98, %v333
  %v335 = vpop.f32.mrf.mxu0
  %v336 = vadd.f32 %v102, %v335
  %337 = vmatprep.mubr.bf16.mxu0 0
  %338 = vmatmul.mubr.bf16.gmra.mxu0 %v76
  %v339 = vpop.f32.mrf.mxu0
  %v340 = vadd.f32 %v98, %v339
  %v341 = vpop.f32.mrf.mxu0
  %v342 = vadd.f32 %v102, %v341
  %v343 = vpop.f32.mrf.mxu0
  %v344 = vpop.f32.mrf.mxu0
  %345 = vdwg.mxu0
  %v346 = vmax.f32 %v220, 0.0
  %v347 = vmax.f32 %v222, 0.0
  %v348 = vmax.f32 %v224, 0.0
  %v349 = vmax.f32 %v226, 0.0
  %v350 = vmax.f32 %v230, 0.0
  %v351 = vmax.f32 %v232, 0.0
  %v352 = vmax.f32 %v234, 0.0
  %v353 = vmax.f32 %v236, 0.0
  %v354 = vmax.f32 %v240, 0.0
  %v355 = vmax.f32 %v242, 0.0
  %v356 = vmax.f32 %v244, 0.0
  %v357 = vmax.f32 %v246, 0.0
  %v358 = vmax.f32 %v250, 0.0
  %v359 = vmax.f32 %v252, 0.0
  %v360 = vmax.f32 %v254, 0.0
  %v361 = vmax.f32 %v256, 0.0
  %v362 = vmax.f32 %v260, 0.0
  %v363 = vmax.f32 %v262, 0.0
  %v364 = vmax.f32 %v264, 0.0
  %v365 = vmax.f32 %v266, 0.0
  %v366 = vmax.f32 %v270, 0.0
  %v367 = vmax.f32 %v272, 0.0
  %v368 = vmax.f32 %v274, 0.0
  %v369 = vmax.f32 %v276, 0.0
  %v370 = vmax.f32 %v280, 0.0
  %v371 = vmax.f32 %v282, 0.0
  %v372 = vmax.f32 %v284, 0.0
  %v373 = vmax.f32 %v286, 0.0
  %v374 = vmax.f32 %v290, 0.0
  %v375 = vmax.f32 %v292, 0.0
  %v376 = vmax.f32 %v294, 0.0
  %v377 = vmax.f32 %v296, 0.0
  %v378 = vmax.f32 %v300, 0.0
  %v379 = vmax.f32 %v302, 0.0
  %v380 = vmax.f32 %v304, 0.0
  %v381 = vmax.f32 %v306, 0.0
  %v382 = vmax.f32 %v310, 0.0
  %v383 = vmax.f32 %v312, 0.0
  %v384 = vmax.f32 %v314, 0.0
  %v385 = vmax.f32 %v316, 0.0
  %v386 = vmax.f32 %v320, 0.0
  %v387 = vmax.f32 %v322, 0.0
  %v388 = vmax.f32 %v324, 0.0
  %v389 = vmax.f32 %v326, 0.0
  %v390 = vmax.f32 %v330, 0.0
  %v391 = vmax.f32 %v332, 0.0
  %v392 = vmax.f32 %v334, 0.0
  %v393 = vmax.f32 %v336, 0.0
  %v394 = vmax.f32 %v340, 0.0
  %v395 = vmax.f32 %v342, 0.0
  %v396 = vpack.c.bf16 %v348, %v346
  %v397 = vpack.c.bf16 %v349, %v347
  %v398 = vpack.c.bf16 %v352, %v350
  %v399 = vpack.c.bf16 %v353, %v351
  %v400 = vpack.c.bf16 %v356, %v354
  %v401 = vpack.c.bf16 %v357, %v355
  %v402 = vpack.c.bf16 %v360, %v358
  %v403 = vpack.c.bf16 %v361, %v359
  %v404 = vpack.c.bf16 %v364, %v362
  %v405 = vpack.c.bf16 %v365, %v363
  %v406 = vpack.c.bf16 %v368, %v366
  %v407 = vpack.c.bf16 %v369, %v367
  %v408 = vpack.c.bf16 %v372, %v370
  %v409 = vpack.c.bf16 %v373, %v371
  %v410 = vpack.c.bf16 %v376, %v374
  %v411 = vpack.c.bf16 %v377, %v375
  %v412 = vpack.c.bf16 %v380, %v378
  %v413 = vpack.c.bf16 %v381, %v379
  %v414 = vpack.c.bf16 %v384, %v382
  %v415 = vpack.c.bf16 %v385, %v383
  %v416 = vpack.c.bf16 %v388, %v386
  %v417 = vpack.c.bf16 %v389, %v387
  %v418 = vpack.c.bf16 %v392, %v390
  %v419 = vpack.c.bf16 %v393, %v391
  %v420 = vpack.c.bf16 %v394, %v394
  %v421 = vpack.c.bf16 %v395, %v395
  %v422 = vld [vmem:[%s3] sm:$0xf]
  %v423 = vld [vmem:[%s3 + $0x4] sm:$0xf]
  %v424 = vld [vmem:[%s3 + $0x8] sm:$0xf]
  %v425 = vld [vmem:[%s3 + $0xc] sm:$0xf]
  %v426 = vld [vmem:[%s3 + $0x10] sm:$0xf]
  %v427 = vld [vmem:[%s3 + $0x14] sm:$0xf]
  %v428 = vld [vmem:[%s3 + $0x18] sm:$0xf]
  %v429 = vld [vmem:[%s3 + $0x1c] sm:$0xf]
  %v430 = vld [vmem:[%s3 + $0x20] sm:$0xf]
  %v431 = vld [vmem:[%s3 + $0x24] sm:$0xf]
  %v432 = vld [vmem:[%s3 + $0x28] sm:$0xf]
  %v433 = vld [vmem:[%s3 + $0x2c] sm:$0xf]
  %v434 = vld [vmem:[%s3 + $0x30] sm:$0xf]
  %v435 = vld [vmem:[%s3 + $0x34] sm:$0xf]
  %v436 = vld [vmem:[%s3 + $0x38] sm:$0xf]
  %v437 = vld [vmem:[%s3 + $0x3c] sm:$0xf]
  %v438 = vld [vmem:[%s3 + $0x40] sm:$0xf]
  %v439 = vld [vmem:[%s3 + $0x44] sm:$0xf]
  %v440 = vld [vmem:[%s3 + $0x48] sm:$0xf]
  %v441 = vld [vmem:[%s3 + $0x4c] sm:$0xf]
  %v442 = vld [vmem:[%s3 + $0x50] sm:$0xf]
  %v443 = vld [vmem:[%s3 + $0x54] sm:$0xf]
  %v444 = vld [vmem:[%s3 + $0x58] sm:$0xf]
  %v445 = vld [vmem:[%s3 + $0x5c] sm:$0xf]
  %v446 = vld [vmem:[%s3 + $0x60] sm:$0xf]
  %v447 = vld [vmem:[%s3 + $0x64] sm:$0xf]
  %v448 = vld [vmem:[%s3 + $0x68] sm:$0xf]
  %v449 = vld [vmem:[%s3 + $0x6c] sm:$0xf]
  %v450 = vld [vmem:[%s3 + $0x70] sm:$0xf]
  %v451 = vld [vmem:[%s3 + $0x74] sm:$0xf]
  %v452 = vld [vmem:[%s3 + $0x78] sm:$0xf]
  %v453 = vld [vmem:[%s3 + $0x7c] sm:$0xf]
  %v454 = vld [vmem:[%s4] sm:$0x1]
  %v456 = vlaneseq
  %v457 = vshrl.u32 %v456, 7
  %v458 = vsub.s32 0, %v457
  %v459 = vrot.slane %v454, %v458
  %v493 = vunpack.c.l.b16 %v422
  %v494 = vunpack.c.l.b16 %v423
  %v495 = vunpack.c.l.b16 %v424
  %v496 = vunpack.c.l.b16 %v425
  %v497 = vunpack.c.l.b16 %v426
  %v498 = vunpack.c.l.b16 %v427
  %v499 = vunpack.c.l.b16 %v428
  %v500 = vunpack.c.l.b16 %v429
  %v501 = vunpack.c.l.b16 %v430
  %v502 = vunpack.c.l.b16 %v431
  %v503 = vunpack.c.l.b16 %v432
  %v504 = vunpack.c.l.b16 %v433
  %v505 = vunpack.c.l.b16 %v434
  %v506 = vunpack.c.l.b16 %v435
  %v507 = vunpack.c.l.b16 %v436
  %v508 = vunpack.c.l.b16 %v437
  %v509 = vunpack.c.l.b16 %v438
  %v510 = vunpack.c.l.b16 %v439
  %v511 = vunpack.c.l.b16 %v440
  %v512 = vunpack.c.l.b16 %v441
  %v513 = vunpack.c.l.b16 %v442
  %v514 = vunpack.c.l.b16 %v443
  %v515 = vunpack.c.l.b16 %v444
  %v516 = vunpack.c.l.b16 %v445
  %v517 = vunpack.c.l.b16 %v446
  %v518 = vunpack.c.l.b16 %v447
  %v519 = vunpack.c.l.b16 %v448
  %v520 = vunpack.c.l.b16 %v449
  %v521 = vunpack.c.l.b16 %v450
  %v522 = vunpack.c.l.b16 %v451
  %v523 = vunpack.c.l.b16 %v452
  %v524 = vunpack.c.l.b16 %v453
  %v525 = vpack.c.b16 %v494, %v493
  %v526 = vpack.c.b16 %v496, %v495
  %v527 = vpack.c.b16 %v498, %v497
  %v528 = vpack.c.b16 %v500, %v499
  %v529 = vpack.c.b16 %v502, %v501
  %v530 = vpack.c.b16 %v504, %v503
  %v531 = vpack.c.b16 %v506, %v505
  %v532 = vpack.c.b16 %v508, %v507
  %v533 = vpack.c.b16 %v510, %v509
  %v534 = vpack.c.b16 %v512, %v511
  %v535 = vpack.c.b16 %v514, %v513
  %v536 = vpack.c.b16 %v516, %v515
  %v537 = vpack.c.b16 %v518, %v517
  %v538 = vpack.c.b16 %v520, %v519
  %v539 = vpack.c.b16 %v522, %v521
  %v540 = vpack.c.b16 %v524, %v523
  %557 = vmatprep.subr.bf16.mxu0 0
  %558 = vmatpush1.bf16.msra.mxu0 %v532
  %559 = vmatprep.subr.bf16.mxu0 0
  %560 = vmatpush1.bf16.msra.mxu0 %v531
  %561 = vmatprep.subr.bf16.mxu0 0
  %562 = vmatpush1.bf16.msra.mxu0 %v530
  %563 = vmatprep.subr.bf16.mxu0 0
  %564 = vmatpush1.bf16.msra.mxu0 %v529
  %565 = vmatprep.subr.bf16.mxu0 0
  %566 = vmatpush1.bf16.msra.mxu0 %v528
  %567 = vmatprep.subr.bf16.mxu0 0
  %568 = vmatpush1.bf16.msra.mxu0 %v527
  %569 = vmatprep.subr.bf16.mxu0 0
  %570 = vmatpush1.bf16.msra.mxu0 %v526
  %571 = vmatprep.subr.bf16.mxu0 0
  %572 = vmatpush1.bf16.msra.mxu0 %v525
  %573 = vmatprep.subr.bf16.mxu0 0
  %574 = vmatpush2.bf16.msra.mxu0 %v540
  %575 = vmatprep.subr.bf16.mxu0 0
  %576 = vmatpush2.bf16.msra.mxu0 %v539
  %577 = vmatprep.subr.bf16.mxu0 0
  %578 = vmatpush2.bf16.msra.mxu0 %v538
  %579 = vmatprep.subr.bf16.mxu0 0
  %580 = vmatpush2.bf16.msra.mxu0 %v537
  %581 = vmatprep.subr.bf16.mxu0 0
  %582 = vmatpush2.bf16.msra.mxu0 %v536
  %583 = vmatprep.subr.bf16.mxu0 0
  %584 = vmatpush2.bf16.msra.mxu0 %v535
  %585 = vmatprep.subr.bf16.mxu0 0
  %586 = vmatpush2.bf16.msra.mxu0 %v534
  %587 = vmatprep.subr.bf16.mxu0 0
  %588 = vmatpush2.bf16.msra.mxu0 %v533
  %589 = vmatprep.mubr.bf16.mxu0 %v397
  %590 = vmatmul.mubr.bf16.gmra.mxu0 %v396
  %v591 = vpop.f32.mrf.mxu0
  %v592 = vadd.f32 %v459, %v591
  %v593 = vpop.f32.mrf.mxu0
  %v594 = vpop.f32.mrf.mxu0
  %v595 = vadd.f32 %v459, %v594
  %v596 = vpop.f32.mrf.mxu0
  %597 = vmatprep.mubr.bf16.mxu0 %v399
  %598 = vmatmul.mubr.bf16.gmra.mxu0 %v398
  %v599 = vpop.f32.mrf.mxu0
  %v600 = vadd.f32 %v459, %v599
  %v601 = vpop.f32.mrf.mxu0
  %v602 = vpop.f32.mrf.mxu0
  %v603 = vadd.f32 %v459, %v602
  %v604 = vpop.f32.mrf.mxu0
  %605 = vmatprep.mubr.bf16.mxu0 %v401
  %606 = vmatmul.mubr.bf16.gmra.mxu0 %v400
  %v607 = vpop.f32.mrf.mxu0
  %v608 = vadd.f32 %v459, %v607
  %v609 = vpop.f32.mrf.mxu0
  %v610 = vpop.f32.mrf.mxu0
  %v611 = vadd.f32 %v459, %v610
  %v612 = vpop.f32.mrf.mxu0
  %613 = vmatprep.mubr.bf16.mxu0 %v403
  %614 = vmatmul.mubr.bf16.gmra.mxu0 %v402
  %v615 = vpop.f32.mrf.mxu0
  %v616 = vadd.f32 %v459, %v615
  %v617 = vpop.f32.mrf.mxu0
  %v618 = vpop.f32.mrf.mxu0
  %v619 = vadd.f32 %v459, %v618
  %v620 = vpop.f32.mrf.mxu0
  %621 = vmatprep.mubr.bf16.mxu0 %v405
  %622 = vmatmul.mubr.bf16.gmra.mxu0 %v404
  %v623 = vpop.f32.mrf.mxu0
  %v624 = vadd.f32 %v459, %v623
  %v625 = vpop.f32.mrf.mxu0
  %v626 = vpop.f32.mrf.mxu0
  %v627 = vadd.f32 %v459, %v626
  %v628 = vpop.f32.mrf.mxu0
  %629 = vmatprep.mubr.bf16.mxu0 %v407
  %630 = vmatmul.mubr.bf16.gmra.mxu0 %v406
  %v631 = vpop.f32.mrf.mxu0
  %v632 = vadd.f32 %v459, %v631
  %v633 = vpop.f32.mrf.mxu0
  %v634 = vpop.f32.mrf.mxu0
  %v635 = vadd.f32 %v459, %v634
  %v636 = vpop.f32.mrf.mxu0
  %637 = vmatprep.mubr.bf16.mxu0 %v409
  %638 = vmatmul.mubr.bf16.gmra.mxu0 %v408
  %v639 = vpop.f32.mrf.mxu0
  %v640 = vadd.f32 %v459, %v639
  %v641 = vpop.f32.mrf.mxu0
  %v642 = vpop.f32.mrf.mxu0
  %v643 = vadd.f32 %v459, %v642
  %v644 = vpop.f32.mrf.mxu0
  %645 = vmatprep.mubr.bf16.mxu0 %v411
  %646 = vmatmul.mubr.bf16.gmra.mxu0 %v410
  %v647 = vpop.f32.mrf.mxu0
  %v648 = vadd.f32 %v459, %v647
  %v649 = vpop.f32.mrf.mxu0
  %v650 = vpop.f32.mrf.mxu0
  %v651 = vadd.f32 %v459, %v650
  %v652 = vpop.f32.mrf.mxu0
  %653 = vmatprep.mubr.bf16.mxu0 %v413
  %654 = vmatmul.mubr.bf16.gmra.mxu0 %v412
  %v655 = vpop.f32.mrf.mxu0
  %v656 = vadd.f32 %v459, %v655
  %v657 = vpop.f32.mrf.mxu0
  %v658 = vpop.f32.mrf.mxu0
  %v659 = vadd.f32 %v459, %v658
  %v660 = vpop.f32.mrf.mxu0
  %661 = vmatprep.mubr.bf16.mxu0 %v415
  %662 = vmatmul.mubr.bf16.gmra.mxu0 %v414
  %v663 = vpop.f32.mrf.mxu0
  %v664 = vadd.f32 %v459, %v663
  %v665 = vpop.f32.mrf.mxu0
  %v666 = vpop.f32.mrf.mxu0
  %v667 = vadd.f32 %v459, %v666
  %v668 = vpop.f32.mrf.mxu0
  %669 = vmatprep.mubr.bf16.mxu0 %v417
  %670 = vmatmul.mubr.bf16.gmra.mxu0 %v416
  %v671 = vpop.f32.mrf.mxu0
  %v672 = vadd.f32 %v459, %v671
  %v673 = vpop.f32.mrf.mxu0
  %v674 = vpop.f32.mrf.mxu0
  %v675 = vadd.f32 %v459, %v674
  %v676 = vpop.f32.mrf.mxu0
  %677 = vmatprep.mubr.bf16.mxu0 %v419
  %678 = vmatmul.mubr.bf16.gmra.mxu0 %v418
  %v679 = vpop.f32.mrf.mxu0
  %v680 = vadd.f32 %v459, %v679
  %v681 = vpop.f32.mrf.mxu0
  %v682 = vpop.f32.mrf.mxu0
  %v683 = vadd.f32 %v459, %v682
  %v684 = vpop.f32.mrf.mxu0
  %685 = vmatprep.mubr.bf16.mxu0 %v421
  %686 = vmatmul.mubr.bf16.gmra.mxu0 %v420
  %v687 = vpop.f32.mrf.mxu0
  %v688 = vadd.f32 %v459, %v687
  %v689 = vpop.f32.mrf.mxu0
  %v690 = vpop.f32.mrf.mxu0
  %v691 = vpop.f32.mrf.mxu0
  %692 = vdwg.mxu0
  %v693 = vmax.f32 %v592, 0.0
  %v694 = vmax.f32 %v595, 0.0
  %v695 = vmax.f32 %v600, 0.0
  %v696 = vmax.f32 %v603, 0.0
  %v697 = vmax.f32 %v608, 0.0
  %v698 = vmax.f32 %v611, 0.0
  %v699 = vmax.f32 %v616, 0.0
  %v700 = vmax.f32 %v619, 0.0
  %v701 = vmax.f32 %v624, 0.0
  %v702 = vmax.f32 %v627, 0.0
  %v703 = vmax.f32 %v632, 0.0
  %v704 = vmax.f32 %v635, 0.0
  %v705 = vmax.f32 %v640, 0.0
  %v706 = vmax.f32 %v643, 0.0
  %v707 = vmax.f32 %v648, 0.0
  %v708 = vmax.f32 %v651, 0.0
  %v709 = vmax.f32 %v656, 0.0
  %v710 = vmax.f32 %v659, 0.0
  %v711 = vmax.f32 %v664, 0.0
  %v712 = vmax.f32 %v667, 0.0
  %v713 = vmax.f32 %v672, 0.0
  %v714 = vmax.f32 %v675, 0.0
  %v715 = vmax.f32 %v680, 0.0
  %v716 = vmax.f32 %v683, 0.0
  %v717 = vmax.f32 %v688, 0.0
  %v718 = vpack.c.bf16 %v694, %v693
  %v719 = vpack.c.bf16 %v696, %v695
  %v720 = vpack.c.bf16 %v698, %v697
  %v721 = vpack.c.bf16 %v700, %v699
  %v722 = vpack.c.bf16 %v702, %v701
  %v723 = vpack.c.bf16 %v704, %v703
  %v724 = vpack.c.bf16 %v706, %v705
  %v725 = vpack.c.bf16 %v708, %v707
  %v726 = vpack.c.bf16 %v710, %v709
  %v727 = vpack.c.bf16 %v712, %v711
  %v728 = vpack.c.bf16 %v714, %v713
  %v729 = vpack.c.bf16 %v716, %v715
  %v730 = vpack.c.bf16 %v717, %v717
  %v731 = vld [vmem:[%s5] sm:$0xf]
  %v732 = vld [vmem:[%s5 + $0x4] sm:$0xf]
  %v733 = vld [vmem:[%s5 + $0x8] sm:$0xf]
  %v734 = vld [vmem:[%s5 + $0xc] sm:$0xf]
  %v735 = vld [vmem:[%s5 + $0x10] sm:$0xf]
  %v736 = vld [vmem:[%s5 + $0x14] sm:$0xf]
  %v737 = vld [vmem:[%s5 + $0x18] sm:$0xf]
  %v738 = vld [vmem:[%s5 + $0x1c] sm:$0xf]
  %v739 = vld [vmem:[%s5 + $0x20] sm:$0xf]
  %v740 = vld [vmem:[%s5 + $0x24] sm:$0xf]
  %v741 = vld [vmem:[%s5 + $0x28] sm:$0xf]
  %v742 = vld [vmem:[%s5 + $0x2c] sm:$0xf]
  %v743 = vld [vmem:[%s5 + $0x30] sm:$0xf]
  %v744 = vld [vmem:[%s5 + $0x34] sm:$0xf]
  %v745 = vld [vmem:[%s5 + $0x38] sm:$0xf]
  %v746 = vld [vmem:[%s5 + $0x3c] sm:$0xf]
  %v747 = vld [vmem:[%s6] sm:$0x1]
  %v749 = vlaneseq
  %v750 = vshrl.u32 %v749, 7
  %v751 = vsub.s32 0, %v750
  %v752 = vrot.slane %v747, %v751
  %v770 = vunpack.c.l.b16 %v731
  %v771 = vunpack.c.l.b16 %v732
  %v772 = vunpack.c.l.b16 %v733
  %v773 = vunpack.c.l.b16 %v734
  %v774 = vunpack.c.l.b16 %v735
  %v775 = vunpack.c.l.b16 %v736
  %v776 = vunpack.c.l.b16 %v737
  %v777 = vunpack.c.l.b16 %v738
  %v778 = vunpack.c.l.b16 %v739
  %v779 = vunpack.c.l.b16 %v740
  %v780 = vunpack.c.l.b16 %v741
  %v781 = vunpack.c.l.b16 %v742
  %v782 = vunpack.c.l.b16 %v743
  %v783 = vunpack.c.l.b16 %v744
  %v784 = vunpack.c.l.b16 %v745
  %v785 = vunpack.c.l.b16 %v746
  %v786 = vpack.c.b16 %v771, %v770
  %v787 = vpack.c.b16 %v773, %v772
  %v788 = vpack.c.b16 %v775, %v774
  %v789 = vpack.c.b16 %v777, %v776
  %v790 = vpack.c.b16 %v779, %v778
  %v791 = vpack.c.b16 %v781, %v780
  %v792 = vpack.c.b16 %v783, %v782
  %v793 = vpack.c.b16 %v785, %v784
  %802 = vmatprep.subr.bf16.mxu0 0
  %803 = vmatpush1.bf16.msra.mxu0 %v793
  %804 = vmatprep.subr.bf16.mxu0 0
  %805 = vmatpush1.bf16.msra.mxu0 %v792
  %806 = vmatprep.subr.bf16.mxu0 0
  %807 = vmatpush1.bf16.msra.mxu0 %v791
  %808 = vmatprep.subr.bf16.mxu0 0
  %809 = vmatpush1.bf16.msra.mxu0 %v790
  %810 = vmatprep.subr.bf16.mxu0 0
  %811 = vmatpush1.bf16.msra.mxu0 %v789
  %812 = vmatprep.subr.bf16.mxu0 0
  %813 = vmatpush1.bf16.msra.mxu0 %v788
  %814 = vmatprep.subr.bf16.mxu0 0
  %815 = vmatpush1.bf16.msra.mxu0 %v787
  %816 = vmatprep.subr.bf16.mxu0 0
  %817 = vmatpush1.bf16.msra.mxu0 %v786
  %818 = vmatprep.subr.bf16.mxu0 0
  %819 = vmatpush2.bf16.msra.mxu0 0
  %820 = vmatprep.subr.bf16.mxu0 0
  %821 = vmatpush2.bf16.msra.mxu0 0
  %822 = vmatprep.subr.bf16.mxu0 0
  %823 = vmatpush2.bf16.msra.mxu0 0
  %824 = vmatprep.subr.bf16.mxu0 0
  %825 = vmatpush2.bf16.msra.mxu0 0
  %826 = vmatprep.subr.bf16.mxu0 0
  %827 = vmatpush2.bf16.msra.mxu0 0
  %828 = vmatprep.subr.bf16.mxu0 0
  %829 = vmatpush2.bf16.msra.mxu0 0
  %830 = vmatprep.subr.bf16.mxu0 0
  %831 = vmatpush2.bf16.msra.mxu0 0
  %832 = vmatprep.subr.bf16.mxu0 0
  %833 = vmatpush2.bf16.msra.mxu0 0
  %834 = vmatprep.mubr.bf16.mxu0 0
  %835 = vmatmul.mubr.bf16.gmra.mxu0 %v718
  %v836 = vpop.f32.mrf.mxu0
  %v837 = vadd.f32 %v752, %v836
  %v838 = vpop.f32.mrf.mxu0
  %v839 = vpop.f32.mrf.mxu0
  %v840 = vadd.f32 %v752, %v839
  %v841 = vpop.f32.mrf.mxu0
  %842 = vmatprep.mubr.bf16.mxu0 0
  %843 = vmatmul.mubr.bf16.gmra.mxu0 %v719
  %v844 = vpop.f32.mrf.mxu0
  %v845 = vadd.f32 %v752, %v844
  %v846 = vpop.f32.mrf.mxu0
  %v847 = vpop.f32.mrf.mxu0
  %v848 = vadd.f32 %v752, %v847
  %v849 = vpop.f32.mrf.mxu0
  %850 = vmatprep.mubr.bf16.mxu0 0
  %851 = vmatmul.mubr.bf16.gmra.mxu0 %v720
  %v852 = vpop.f32.mrf.mxu0
  %v853 = vadd.f32 %v752, %v852
  %v854 = vpop.f32.mrf.mxu0
  %v855 = vpop.f32.mrf.mxu0
  %v856 = vadd.f32 %v752, %v855
  %v857 = vpop.f32.mrf.mxu0
  %858 = vmatprep.mubr.bf16.mxu0 0
  %859 = vmatmul.mubr.bf16.gmra.mxu0 %v721
  %v860 = vpop.f32.mrf.mxu0
  %v861 = vadd.f32 %v752, %v860
  %v862 = vpop.f32.mrf.mxu0
  %v863 = vpop.f32.mrf.mxu0
  %v864 = vadd.f32 %v752, %v863
  %v865 = vpop.f32.mrf.mxu0
  %866 = vmatprep.mubr.bf16.mxu0 0
  %867 = vmatmul.mubr.bf16.gmra.mxu0 %v722
  %v868 = vpop.f32.mrf.mxu0
  %v869 = vadd.f32 %v752, %v868
  %v870 = vpop.f32.mrf.mxu0
  %v871 = vpop.f32.mrf.mxu0
  %v872 = vadd.f32 %v752, %v871
  %v873 = vpop.f32.mrf.mxu0
  %874 = vmatprep.mubr.bf16.mxu0 0
  %875 = vmatmul.mubr.bf16.gmra.mxu0 %v723
  %v876 = vpop.f32.mrf.mxu0
  %v877 = vadd.f32 %v752, %v876
  %v878 = vpop.f32.mrf.mxu0
  %v879 = vpop.f32.mrf.mxu0
  %v880 = vadd.f32 %v752, %v879
  %v881 = vpop.f32.mrf.mxu0
  %882 = vmatprep.mubr.bf16.mxu0 0
  %883 = vmatmul.mubr.bf16.gmra.mxu0 %v724
  %v884 = vpop.f32.mrf.mxu0
  %v885 = vadd.f32 %v752, %v884
  %v886 = vpop.f32.mrf.mxu0
  %v887 = vpop.f32.mrf.mxu0
  %v888 = vadd.f32 %v752, %v887
  %v889 = vpop.f32.mrf.mxu0
  %890 = vmatprep.mubr.bf16.mxu0 0
  %891 = vmatmul.mubr.bf16.gmra.mxu0 %v725
  %v892 = vpop.f32.mrf.mxu0
  %v893 = vadd.f32 %v752, %v892
  %v894 = vpop.f32.mrf.mxu0
  %v895 = vpop.f32.mrf.mxu0
  %v896 = vadd.f32 %v752, %v895
  %v897 = vpop.f32.mrf.mxu0
  %898 = vmatprep.mubr.bf16.mxu0 0
  %899 = vmatmul.mubr.bf16.gmra.mxu0 %v726
  %v900 = vpop.f32.mrf.mxu0
  %v901 = vadd.f32 %v752, %v900
  %v902 = vpop.f32.mrf.mxu0
  %v903 = vpop.f32.mrf.mxu0
  %v904 = vadd.f32 %v752, %v903
  %v905 = vpop.f32.mrf.mxu0
  %906 = vmatprep.mubr.bf16.mxu0 0
  %907 = vmatmul.mubr.bf16.gmra.mxu0 %v727
  %v908 = vpop.f32.mrf.mxu0
  %v909 = vadd.f32 %v752, %v908
  %v910 = vpop.f32.mrf.mxu0
  %v911 = vpop.f32.mrf.mxu0
  %v912 = vadd.f32 %v752, %v911
  %v913 = vpop.f32.mrf.mxu0
  %914 = vmatprep.mubr.bf16.mxu0 0
  %915 = vmatmul.mubr.bf16.gmra.mxu0 %v728
  %v916 = vpop.f32.mrf.mxu0
  %v917 = vadd.f32 %v752, %v916
  %v918 = vpop.f32.mrf.mxu0
  %v919 = vpop.f32.mrf.mxu0
  %v920 = vadd.f32 %v752, %v919
  %v921 = vpop.f32.mrf.mxu0
  %922 = vmatprep.mubr.bf16.mxu0 0
  %923 = vmatmul.mubr.bf16.gmra.mxu0 %v729
  %v924 = vpop.f32.mrf.mxu0
  %v925 = vadd.f32 %v752, %v924
  %v926 = vpop.f32.mrf.mxu0
  %v927 = vpop.f32.mrf.mxu0
  %v928 = vadd.f32 %v752, %v927
  %v929 = vpop.f32.mrf.mxu0
  %930 = vmatprep.mubr.bf16.mxu0 0
  %931 = vmatmul.mubr.bf16.gmra.mxu0 %v730
  %v932 = vpop.f32.mrf.mxu0
  %v933 = vadd.f32 %v752, %v932
  %v934 = vpop.f32.mrf.mxu0
  %v935 = vpop.f32.mrf.mxu0
  %v936 = vpop.f32.mrf.mxu0
  %937 = vdwg.mxu0
  %v938 = vmax.f32 %v837, 0.0
  %v939 = vmax.f32 %v840, 0.0
  %v940 = vmax.f32 %v845, 0.0
  %v941 = vmax.f32 %v848, 0.0
  %v942 = vmax.f32 %v853, 0.0
  %v943 = vmax.f32 %v856, 0.0
  %v944 = vmax.f32 %v861, 0.0
  %v945 = vmax.f32 %v864, 0.0
  %v946 = vmax.f32 %v869, 0.0
  %v947 = vmax.f32 %v872, 0.0
  %v948 = vmax.f32 %v877, 0.0
  %v949 = vmax.f32 %v880, 0.0
  %v950 = vmax.f32 %v885, 0.0
  %v951 = vmax.f32 %v888, 0.0
  %v952 = vmax.f32 %v893, 0.0
  %v953 = vmax.f32 %v896, 0.0
  %v954 = vmax.f32 %v901, 0.0
  %v955 = vmax.f32 %v904, 0.0
  %v956 = vmax.f32 %v909, 0.0
  %v957 = vmax.f32 %v912, 0.0
  %v958 = vmax.f32 %v917, 0.0
  %v959 = vmax.f32 %v920, 0.0
  %v960 = vmax.f32 %v925, 0.0
  %v961 = vmax.f32 %v928, 0.0
  %v962 = vmax.f32 %v933, 0.0
  %v963 = vpack.c.bf16 %v939, %v938
  %v964 = vpack.c.bf16 %v941, %v940
  %v965 = vpack.c.bf16 %v943, %v942
  %v966 = vpack.c.bf16 %v945, %v944
  %v967 = vpack.c.bf16 %v947, %v946
  %v968 = vpack.c.bf16 %v949, %v948
  %v969 = vpack.c.bf16 %v951, %v950
  %v970 = vpack.c.bf16 %v953, %v952
  %v971 = vpack.c.bf16 %v955, %v954
  %v972 = vpack.c.bf16 %v957, %v956
  %v973 = vpack.c.bf16 %v959, %v958
  %v974 = vpack.c.bf16 %v961, %v960
  %v975 = vpack.c.bf16 %v962, %v962
  %v976 = vld [vmem:[%s7] sm:$0xff]
  %v977 = vld [vmem:[%s7 + $0x8] sm:$0xff]
  %v978 = vld [vmem:[%s7 + $0x10] sm:$0xff]
  %v979 = vld [vmem:[%s7 + $0x18] sm:$0xff]
  %v980 = vld [vmem:[%s7 + $0x20] sm:$0xff]
  %v981 = vld [vmem:[%s7 + $0x28] sm:$0xff]
  %v982 = vld [vmem:[%s7 + $0x30] sm:$0xff]
  %v983 = vld [vmem:[%s7 + $0x38] sm:$0xff]
  %v984 = vld [vmem:[%s7 + $0x40] sm:$0xff]
  %v985 = vld [vmem:[%s7 + $0x48] sm:$0xff]
  %v986 = vld [vmem:[%s7 + $0x50] sm:$0xff]
  %v987 = vld [vmem:[%s7 + $0x58] sm:$0xff]
  %v988 = vld [vmem:[%s7 + $0x60] sm:$0xff]
  %v989 = vld [vmem:[%s7 + $0x68] sm:$0xff]
  %v990 = vld [vmem:[%s7 + $0x70] sm:$0xff]
  %v991 = vld [vmem:[%s7 + $0x78] sm:$0xff]
  %v992 = vld [vmem:[%s8] sm:$0x3]
  %v994 = vlaneseq
  %v995 = vshrl.u32 %v994, 7
  %v996 = vsub.s32 0, %v995
  %v997 = vrot.slane %v992, %v996
  %v998 = vlaneseq
  %v999 = vshrl.u32 %v998, 7
  %v1000 = vsub.s32 1, %v999
  %v1001 = vrot.slane %v992, %v1000
  %v1020 = vunpack.c.l.b16 %v976
  %v1021 = vunpack.c.h.b16 %v976
  %v1022 = vunpack.c.l.b16 %v977
  %v1023 = vunpack.c.h.b16 %v977
  %v1024 = vunpack.c.l.b16 %v978
  %v1025 = vunpack.c.h.b16 %v978
  %v1026 = vunpack.c.l.b16 %v979
  %v1027 = vunpack.c.h.b16 %v979
  %v1028 = vunpack.c.l.b16 %v980
  %v1029 = vunpack.c.h.b16 %v980
  %v1030 = vunpack.c.l.b16 %v981
  %v1031 = vunpack.c.h.b16 %v981
  %v1032 = vunpack.c.l.b16 %v982
  %v1033 = vunpack.c.h.b16 %v982
  %v1034 = vunpack.c.l.b16 %v983
  %v1035 = vunpack.c.h.b16 %v983
  %v1036 = vunpack.c.l.b16 %v984
  %v1037 = vunpack.c.h.b16 %v984
  %v1038 = vunpack.c.l.b16 %v985
  %v1039 = vunpack.c.h.b16 %v985
  %v1040 = vunpack.c.l.b16 %v986
  %v1041 = vunpack.c.h.b16 %v986
  %v1042 = vunpack.c.l.b16 %v987
  %v1043 = vunpack.c.h.b16 %v987
  %v1044 = vunpack.c.l.b16 %v988
  %v1045 = vunpack.c.h.b16 %v988
  %v1046 = vunpack.c.l.b16 %v989
  %v1047 = vunpack.c.h.b16 %v989
  %v1048 = vunpack.c.l.b16 %v990
  %v1049 = vunpack.c.h.b16 %v990
  %v1050 = vunpack.c.l.b16 %v991
  %v1051 = vunpack.c.h.b16 %v991
  %v1052 = vpack.c.b16 %v1022, %v1020
  %v1053 = vpack.c.b16 %v1023, %v1021
  %v1054 = vpack.c.b16 %v1026, %v1024
  %v1055 = vpack.c.b16 %v1027, %v1025
  %v1056 = vpack.c.b16 %v1030, %v1028
  %v1057 = vpack.c.b16 %v1031, %v1029
  %v1058 = vpack.c.b16 %v1034, %v1032
  %v1059 = vpack.c.b16 %v1035, %v1033
  %v1060 = vpack.c.b16 %v1038, %v1036
  %v1061 = vpack.c.b16 %v1039, %v1037
  %v1062 = vpack.c.b16 %v1042, %v1040
  %v1063 = vpack.c.b16 %v1043, %v1041
  %v1064 = vpack.c.b16 %v1046, %v1044
  %v1065 = vpack.c.b16 %v1047, %v1045
  %v1066 = vpack.c.b16 %v1050, %v1048
  %v1067 = vpack.c.b16 %v1051, %v1049
  %1084 = vmatprep.subr.bf16.mxu0 %v1067
  %1085 = vmatpush1.bf16.msra.mxu0 %v1066
  %1086 = vmatprep.subr.bf16.mxu0 %v1065
  %1087 = vmatpush1.bf16.msra.mxu0 %v1064
  %1088 = vmatprep.subr.bf16.mxu0 %v1063
  %1089 = vmatpush1.bf16.msra.mxu0 %v1062
  %1090 = vmatprep.subr.bf16.mxu0 %v1061
  %1091 = vmatpush1.bf16.msra.mxu0 %v1060
  %1092 = vmatprep.subr.bf16.mxu0 %v1059
  %1093 = vmatpush1.bf16.msra.mxu0 %v1058
  %1094 = vmatprep.subr.bf16.mxu0 %v1057
  %1095 = vmatpush1.bf16.msra.mxu0 %v1056
  %1096 = vmatprep.subr.bf16.mxu0 %v1055
  %1097 = vmatpush1.bf16.msra.mxu0 %v1054
  %1098 = vmatprep.subr.bf16.mxu0 %v1053
  %1099 = vmatpush1.bf16.msra.mxu0 %v1052
  %1100 = vmatprep.subr.bf16.mxu0 0
  %1101 = vmatpush2.bf16.msra.mxu0 0
  %1102 = vmatprep.subr.bf16.mxu0 0
  %1103 = vmatpush2.bf16.msra.mxu0 0
  %1104 = vmatprep.subr.bf16.mxu0 0
  %1105 = vmatpush2.bf16.msra.mxu0 0
  %1106 = vmatprep.subr.bf16.mxu0 0
  %1107 = vmatpush2.bf16.msra.mxu0 0
  %1108 = vmatprep.subr.bf16.mxu0 0
  %1109 = vmatpush2.bf16.msra.mxu0 0
  %1110 = vmatprep.subr.bf16.mxu0 0
  %1111 = vmatpush2.bf16.msra.mxu0 0
  %1112 = vmatprep.subr.bf16.mxu0 0
  %1113 = vmatpush2.bf16.msra.mxu0 0
  %1114 = vmatprep.subr.bf16.mxu0 0
  %1115 = vmatpush2.bf16.msra.mxu0 0
  %1116 = vmatprep.mubr.bf16.mxu0 0
  %1117 = vmatmul.mubr.bf16.gmra.mxu0 %v963
  %v1118 = vpop.f32.mrf.mxu0
  %v1119 = vadd.f32 %v997, %v1118
  %v1120 = vpop.f32.mrf.mxu0
  %v1121 = vadd.f32 %v1001, %v1120
  %v1122 = vpop.f32.mrf.mxu0
  %v1123 = vadd.f32 %v997, %v1122
  %v1124 = vpop.f32.mrf.mxu0
  %v1125 = vadd.f32 %v1001, %v1124
  %1126 = vmatprep.mubr.bf16.mxu0 0
  %1127 = vmatmul.mubr.bf16.gmra.mxu0 %v964
  %v1128 = vpop.f32.mrf.mxu0
  %v1129 = vadd.f32 %v997, %v1128
  %v1130 = vpop.f32.mrf.mxu0
  %v1131 = vadd.f32 %v1001, %v1130
  %v1132 = vpop.f32.mrf.mxu0
  %v1133 = vadd.f32 %v997, %v1132
  %v1134 = vpop.f32.mrf.mxu0
  %v1135 = vadd.f32 %v1001, %v1134
  %1136 = vmatprep.mubr.bf16.mxu0 0
  %1137 = vmatmul.mubr.bf16.gmra.mxu0 %v965
  %v1138 = vpop.f32.mrf.mxu0
  %v1139 = vadd.f32 %v997, %v1138
  %v1140 = vpop.f32.mrf.mxu0
  %v1141 = vadd.f32 %v1001, %v1140
  %v1142 = vpop.f32.mrf.mxu0
  %v1143 = vadd.f32 %v997, %v1142
  %v1144 = vpop.f32.mrf.mxu0
  %v1145 = vadd.f32 %v1001, %v1144
  %1146 = vmatprep.mubr.bf16.mxu0 0
  %1147 = vmatmul.mubr.bf16.gmra.mxu0 %v966
  %v1148 = vpop.f32.mrf.mxu0
  %v1149 = vadd.f32 %v997, %v1148
  %v1150 = vpop.f32.mrf.mxu0
  %v1151 = vadd.f32 %v1001, %v1150
  %v1152 = vpop.f32.mrf.mxu0
  %v1153 = vadd.f32 %v997, %v1152
  %v1154 = vpop.f32.mrf.mxu0
  %v1155 = vadd.f32 %v1001, %v1154
  %1156 = vmatprep.mubr.bf16.mxu0 0
  %1157 = vmatmul.mubr.bf16.gmra.mxu0 %v967
  %v1158 = vpop.f32.mrf.mxu0
  %v1159 = vadd.f32 %v997, %v1158
  %v1160 = vpop.f32.mrf.mxu0
  %v1161 = vadd.f32 %v1001, %v1160
  %v1162 = vpop.f32.mrf.mxu0
  %v1163 = vadd.f32 %v997, %v1162
  %v1164 = vpop.f32.mrf.mxu0
  %v1165 = vadd.f32 %v1001, %v1164
  %1166 = vmatprep.mubr.bf16.mxu0 0
  %1167 = vmatmul.mubr.bf16.gmra.mxu0 %v968
  %v1168 = vpop.f32.mrf.mxu0
  %v1169 = vadd.f32 %v997, %v1168
  %v1170 = vpop.f32.mrf.mxu0
  %v1171 = vadd.f32 %v1001, %v1170
  %v1172 = vpop.f32.mrf.mxu0
  %v1173 = vadd.f32 %v997, %v1172
  %v1174 = vpop.f32.mrf.mxu0
  %v1175 = vadd.f32 %v1001, %v1174
  %1176 = vmatprep.mubr.bf16.mxu0 0
  %1177 = vmatmul.mubr.bf16.gmra.mxu0 %v969
  %v1178 = vpop.f32.mrf.mxu0
  %v1179 = vadd.f32 %v997, %v1178
  %v1180 = vpop.f32.mrf.mxu0
  %v1181 = vadd.f32 %v1001, %v1180
  %v1182 = vpop.f32.mrf.mxu0
  %v1183 = vadd.f32 %v997, %v1182
  %v1184 = vpop.f32.mrf.mxu0
  %v1185 = vadd.f32 %v1001, %v1184
  %1186 = vmatprep.mubr.bf16.mxu0 0
  %1187 = vmatmul.mubr.bf16.gmra.mxu0 %v970
  %v1188 = vpop.f32.mrf.mxu0
  %v1189 = vadd.f32 %v997, %v1188
  %v1190 = vpop.f32.mrf.mxu0
  %v1191 = vadd.f32 %v1001, %v1190
  %v1192 = vpop.f32.mrf.mxu0
  %v1193 = vadd.f32 %v997, %v1192
  %v1194 = vpop.f32.mrf.mxu0
  %v1195 = vadd.f32 %v1001, %v1194
  %1196 = vmatprep.mubr.bf16.mxu0 0
  %1197 = vmatmul.mubr.bf16.gmra.mxu0 %v971
  %v1198 = vpop.f32.mrf.mxu0
  %v1199 = vadd.f32 %v997, %v1198
  %v1200 = vpop.f32.mrf.mxu0
  %v1201 = vadd.f32 %v1001, %v1200
  %v1202 = vpop.f32.mrf.mxu0
  %v1203 = vadd.f32 %v997, %v1202
  %v1204 = vpop.f32.mrf.mxu0
  %v1205 = vadd.f32 %v1001, %v1204
  %1206 = vmatprep.mubr.bf16.mxu0 0
  %1207 = vmatmul.mubr.bf16.gmra.mxu0 %v972
  %v1208 = vpop.f32.mrf.mxu0
  %v1209 = vadd.f32 %v997, %v1208
  %v1210 = vpop.f32.mrf.mxu0
  %v1211 = vadd.f32 %v1001, %v1210
  %v1212 = vpop.f32.mrf.mxu0
  %v1213 = vadd.f32 %v997, %v1212
  %v1214 = vpop.f32.mrf.mxu0
  %v1215 = vadd.f32 %v1001, %v1214
  %1216 = vmatprep.mubr.bf16.mxu0 0
  %1217 = vmatmul.mubr.bf16.gmra.mxu0 %v973
  %v1218 = vpop.f32.mrf.mxu0
  %v1219 = vadd.f32 %v997, %v1218
  %v1220 = vpop.f32.mrf.mxu0
  %v1221 = vadd.f32 %v1001, %v1220
  %v1222 = vpop.f32.mrf.mxu0
  %v1223 = vadd.f32 %v997, %v1222
  %v1224 = vpop.f32.mrf.mxu0
  %v1225 = vadd.f32 %v1001, %v1224
  %1226 = vmatprep.mubr.bf16.mxu0 0
  %1227 = vmatmul.mubr.bf16.gmra.mxu0 %v974
  %v1228 = vpop.f32.mrf.mxu0
  %v1229 = vadd.f32 %v997, %v1228
  %v1230 = vpop.f32.mrf.mxu0
  %v1231 = vadd.f32 %v1001, %v1230
  %v1232 = vpop.f32.mrf.mxu0
  %v1233 = vadd.f32 %v997, %v1232
  %v1234 = vpop.f32.mrf.mxu0
  %v1235 = vadd.f32 %v1001, %v1234
  %1236 = vmatprep.mubr.bf16.mxu0 0
  %1237 = vmatmul.mubr.bf16.gmra.mxu0 %v975
  %v1238 = vpop.f32.mrf.mxu0
  %v1239 = vadd.f32 %v997, %v1238
  %v1240 = vpop.f32.mrf.mxu0
  %v1241 = vadd.f32 %v1001, %v1240
  %v1242 = vpop.f32.mrf.mxu0
  %v1243 = vpop.f32.mrf.mxu0
  %1244 = vdwg.mxu0
  %v1245 = vmax.f32 %v1119, 0.0
  %v1246 = vmax.f32 %v1121, 0.0
  %v1247 = vmax.f32 %v1123, 0.0
  %v1248 = vmax.f32 %v1125, 0.0
  %v1249 = vmax.f32 %v1129, 0.0
  %v1250 = vmax.f32 %v1131, 0.0
  %v1251 = vmax.f32 %v1133, 0.0
  %v1252 = vmax.f32 %v1135, 0.0
  %v1253 = vmax.f32 %v1139, 0.0
  %v1254 = vmax.f32 %v1141, 0.0
  %v1255 = vmax.f32 %v1143, 0.0
  %v1256 = vmax.f32 %v1145, 0.0
  %v1257 = vmax.f32 %v1149, 0.0
  %v1258 = vmax.f32 %v1151, 0.0
  %v1259 = vmax.f32 %v1153, 0.0
  %v1260 = vmax.f32 %v1155, 0.0
  %v1261 = vmax.f32 %v1159, 0.0
  %v1262 = vmax.f32 %v1161, 0.0
  %v1263 = vmax.f32 %v1163, 0.0
  %v1264 = vmax.f32 %v1165, 0.0
  %v1265 = vmax.f32 %v1169, 0.0
  %v1266 = vmax.f32 %v1171, 0.0
  %v1267 = vmax.f32 %v1173, 0.0
  %v1268 = vmax.f32 %v1175, 0.0
  %v1269 = vmax.f32 %v1179, 0.0
  %v1270 = vmax.f32 %v1181, 0.0
  %v1271 = vmax.f32 %v1183, 0.0
  %v1272 = vmax.f32 %v1185, 0.0
  %v1273 = vmax.f32 %v1189, 0.0
  %v1274 = vmax.f32 %v1191, 0.0
  %v1275 = vmax.f32 %v1193, 0.0
  %v1276 = vmax.f32 %v1195, 0.0
  %v1277 = vmax.f32 %v1199, 0.0
  %v1278 = vmax.f32 %v1201, 0.0
  %v1279 = vmax.f32 %v1203, 0.0
  %v1280 = vmax.f32 %v1205, 0.0
  %v1281 = vmax.f32 %v1209, 0.0
  %v1282 = vmax.f32 %v1211, 0.0
  %v1283 = vmax.f32 %v1213, 0.0
  %v1284 = vmax.f32 %v1215, 0.0
  %v1285 = vmax.f32 %v1219, 0.0
  %v1286 = vmax.f32 %v1221, 0.0
  %v1287 = vmax.f32 %v1223, 0.0
  %v1288 = vmax.f32 %v1225, 0.0
  %v1289 = vmax.f32 %v1229, 0.0
  %v1290 = vmax.f32 %v1231, 0.0
  %v1291 = vmax.f32 %v1233, 0.0
  %v1292 = vmax.f32 %v1235, 0.0
  %v1293 = vmax.f32 %v1239, 0.0
  %v1294 = vmax.f32 %v1241, 0.0
  %v1295 = vpack.c.bf16 %v1247, %v1245
  %v1296 = vpack.c.bf16 %v1248, %v1246
  %v1297 = vpack.c.bf16 %v1251, %v1249
  %v1298 = vpack.c.bf16 %v1252, %v1250
  %v1299 = vpack.c.bf16 %v1255, %v1253
  %v1300 = vpack.c.bf16 %v1256, %v1254
  %v1301 = vpack.c.bf16 %v1259, %v1257
  %v1302 = vpack.c.bf16 %v1260, %v1258
  %v1303 = vpack.c.bf16 %v1263, %v1261
  %v1304 = vpack.c.bf16 %v1264, %v1262
  %v1305 = vpack.c.bf16 %v1267, %v1265
  %v1306 = vpack.c.bf16 %v1268, %v1266
  %v1307 = vpack.c.bf16 %v1271, %v1269
  %v1308 = vpack.c.bf16 %v1272, %v1270
  %v1309 = vpack.c.bf16 %v1275, %v1273
  %v1310 = vpack.c.bf16 %v1276, %v1274
  %v1311 = vpack.c.bf16 %v1279, %v1277
  %v1312 = vpack.c.bf16 %v1280, %v1278
  %v1313 = vpack.c.bf16 %v1283, %v1281
  %v1314 = vpack.c.bf16 %v1284, %v1282
  %v1315 = vpack.c.bf16 %v1287, %v1285
  %v1316 = vpack.c.bf16 %v1288, %v1286
  %v1317 = vpack.c.bf16 %v1291, %v1289
  %v1318 = vpack.c.bf16 %v1292, %v1290
  %v1319 = vpack.c.bf16 %v1293, %v1293
  %v1320 = vpack.c.bf16 %v1294, %v1294
  %v1321 = vld [vmem:[%s9] sm:$0xf]
  %v1322 = vld [vmem:[%s9 + $0x4] sm:$0xf]
  %v1323 = vld [vmem:[%s9 + $0x8] sm:$0xf]
  %v1324 = vld [vmem:[%s9 + $0xc] sm:$0xf]
  %v1325 = vld [vmem:[%s9 + $0x10] sm:$0xf]
  %v1326 = vld [vmem:[%s9 + $0x14] sm:$0xf]
  %v1327 = vld [vmem:[%s9 + $0x18] sm:$0xf]
  %v1328 = vld [vmem:[%s9 + $0x1c] sm:$0xf]
  %v1329 = vld [vmem:[%s9 + $0x20] sm:$0xf]
  %v1330 = vld [vmem:[%s9 + $0x24] sm:$0xf]
  %v1331 = vld [vmem:[%s9 + $0x28] sm:$0xf]
  %v1332 = vld [vmem:[%s9 + $0x2c] sm:$0xf]
  %v1333 = vld [vmem:[%s9 + $0x30] sm:$0xf]
  %v1334 = vld [vmem:[%s9 + $0x34] sm:$0xf]
  %v1335 = vld [vmem:[%s9 + $0x38] sm:$0xf]
  %v1336 = vld [vmem:[%s9 + $0x3c] sm:$0xf]
  %v1337 = vld [vmem:[%s9 + $0x40] sm:$0xf]
  %v1338 = vld [vmem:[%s9 + $0x44] sm:$0xf]
  %v1339 = vld [vmem:[%s9 + $0x48] sm:$0xf]
  %v1340 = vld [vmem:[%s9 + $0x4c] sm:$0xf]
  %v1341 = vld [vmem:[%s9 + $0x50] sm:$0xf]
  %v1342 = vld [vmem:[%s9 + $0x54] sm:$0xf]
  %v1343 = vld [vmem:[%s9 + $0x58] sm:$0xf]
  %v1344 = vld [vmem:[%s9 + $0x5c] sm:$0xf]
  %v1345 = vld [vmem:[%s9 + $0x60] sm:$0xf]
  %v1346 = vld [vmem:[%s9 + $0x64] sm:$0xf]
  %v1347 = vld [vmem:[%s9 + $0x68] sm:$0xf]
  %v1348 = vld [vmem:[%s9 + $0x6c] sm:$0xf]
  %v1349 = vld [vmem:[%s9 + $0x70] sm:$0xf]
  %v1350 = vld [vmem:[%s9 + $0x74] sm:$0xf]
  %v1351 = vld [vmem:[%s9 + $0x78] sm:$0xf]
  %v1352 = vld [vmem:[%s9 + $0x7c] sm:$0xf]
  %v1353 = vld [vmem:[%s10] sm:$0x1]
  %v1355 = vlaneseq
  %v1356 = vshrl.u32 %v1355, 7
  %v1357 = vsub.s32 0, %v1356
  %v1358 = vrot.slane %v1353, %v1357
  %v1392 = vunpack.c.l.b16 %v1321
  %v1393 = vunpack.c.l.b16 %v1322
  %v1394 = vunpack.c.l.b16 %v1323
  %v1395 = vunpack.c.l.b16 %v1324
  %v1396 = vunpack.c.l.b16 %v1325
  %v1397 = vunpack.c.l.b16 %v1326
  %v1398 = vunpack.c.l.b16 %v1327
  %v1399 = vunpack.c.l.b16 %v1328
  %v1400 = vunpack.c.l.b16 %v1329
  %v1401 = vunpack.c.l.b16 %v1330
  %v1402 = vunpack.c.l.b16 %v1331
  %v1403 = vunpack.c.l.b16 %v1332
  %v1404 = vunpack.c.l.b16 %v1333
  %v1405 = vunpack.c.l.b16 %v1334
  %v1406 = vunpack.c.l.b16 %v1335
  %v1407 = vunpack.c.l.b16 %v1336
  %v1408 = vunpack.c.l.b16 %v1337
  %v1409 = vunpack.c.l.b16 %v1338
  %v1410 = vunpack.c.l.b16 %v1339
  %v1411 = vunpack.c.l.b16 %v1340
  %v1412 = vunpack.c.l.b16 %v1341
  %v1413 = vunpack.c.l.b16 %v1342
  %v1414 = vunpack.c.l.b16 %v1343
  %v1415 = vunpack.c.l.b16 %v1344
  %v1416 = vunpack.c.l.b16 %v1345
  %v1417 = vunpack.c.l.b16 %v1346
  %v1418 = vunpack.c.l.b16 %v1347
  %v1419 = vunpack.c.l.b16 %v1348
  %v1420 = vunpack.c.l.b16 %v1349
  %v1421 = vunpack.c.l.b16 %v1350
  %v1422 = vunpack.c.l.b16 %v1351
  %v1423 = vunpack.c.l.b16 %v1352
  %v1424 = vpack.c.b16 %v1393, %v1392
  %v1425 = vpack.c.b16 %v1395, %v1394
  %v1426 = vpack.c.b16 %v1397, %v1396
  %v1427 = vpack.c.b16 %v1399, %v1398
  %v1428 = vpack.c.b16 %v1401, %v1400
  %v1429 = vpack.c.b16 %v1403, %v1402
  %v1430 = vpack.c.b16 %v1405, %v1404
  %v1431 = vpack.c.b16 %v1407, %v1406
  %v1432 = vpack.c.b16 %v1409, %v1408
  %v1433 = vpack.c.b16 %v1411, %v1410
  %v1434 = vpack.c.b16 %v1413, %v1412
  %v1435 = vpack.c.b16 %v1415, %v1414
  %v1436 = vpack.c.b16 %v1417, %v1416
  %v1437 = vpack.c.b16 %v1419, %v1418
  %v1438 = vpack.c.b16 %v1421, %v1420
  %v1439 = vpack.c.b16 %v1423, %v1422
  %1456 = vmatprep.subr.bf16.mxu0 0
  %1457 = vmatpush1.bf16.msra.mxu0 %v1431
  %1458 = vmatprep.subr.bf16.mxu0 0
  %1459 = vmatpush1.bf16.msra.mxu0 %v1430
  %1460 = vmatprep.subr.bf16.mxu0 0
  %1461 = vmatpush1.bf16.msra.mxu0 %v1429
  %1462 = vmatprep.subr.bf16.mxu0 0
  %1463 = vmatpush1.bf16.msra.mxu0 %v1428
  %1464 = vmatprep.subr.bf16.mxu0 0
  %1465 = vmatpush1.bf16.msra.mxu0 %v1427
  %1466 = vmatprep.subr.bf16.mxu0 0
  %1467 = vmatpush1.bf16.msra.mxu0 %v1426
  %1468 = vmatprep.subr.bf16.mxu0 0
  %1469 = vmatpush1.bf16.msra.mxu0 %v1425
  %1470 = vmatprep.subr.bf16.mxu0 0
  %1471 = vmatpush1.bf16.msra.mxu0 %v1424
  %1472 = vmatprep.subr.bf16.mxu0 0
  %1473 = vmatpush2.bf16.msra.mxu0 %v1439
  %1474 = vmatprep.subr.bf16.mxu0 0
  %1475 = vmatpush2.bf16.msra.mxu0 %v1438
  %1476 = vmatprep.subr.bf16.mxu0 0
  %1477 = vmatpush2.bf16.msra.mxu0 %v1437
  %1478 = vmatprep.subr.bf16.mxu0 0
  %1479 = vmatpush2.bf16.msra.mxu0 %v1436
  %1480 = vmatprep.subr.bf16.mxu0 0
  %1481 = vmatpush2.bf16.msra.mxu0 %v1435
  %1482 = vmatprep.subr.bf16.mxu0 0
  %1483 = vmatpush2.bf16.msra.mxu0 %v1434
  %1484 = vmatprep.subr.bf16.mxu0 0
  %1485 = vmatpush2.bf16.msra.mxu0 %v1433
  %1486 = vmatprep.subr.bf16.mxu0 0
  %1487 = vmatpush2.bf16.msra.mxu0 %v1432
  %1488 = vmatprep.mubr.bf16.mxu0 %v1296
  %1489 = vmatmul.mubr.bf16.gmra.mxu0 %v1295
  %v1490 = vpop.f32.mrf.mxu0
  %v1491 = vadd.f32 %v1358, %v1490
  %v1492 = vpop.f32.mrf.mxu0
  %v1493 = vpop.f32.mrf.mxu0
  %v1494 = vadd.f32 %v1358, %v1493
  %v1495 = vpop.f32.mrf.mxu0
  %1496 = vmatprep.mubr.bf16.mxu0 %v1298
  %1497 = vmatmul.mubr.bf16.gmra.mxu0 %v1297
  %v1498 = vpop.f32.mrf.mxu0
  %v1499 = vadd.f32 %v1358, %v1498
  %v1500 = vpop.f32.mrf.mxu0
  %v1501 = vpop.f32.mrf.mxu0
  %v1502 = vadd.f32 %v1358, %v1501
  %v1503 = vpop.f32.mrf.mxu0
  %1504 = vmatprep.mubr.bf16.mxu0 %v1300
  %1505 = vmatmul.mubr.bf16.gmra.mxu0 %v1299
  %v1506 = vpop.f32.mrf.mxu0
  %v1507 = vadd.f32 %v1358, %v1506
  %v1508 = vpop.f32.mrf.mxu0
  %v1509 = vpop.f32.mrf.mxu0
  %v1510 = vadd.f32 %v1358, %v1509
  %v1511 = vpop.f32.mrf.mxu0
  %1512 = vmatprep.mubr.bf16.mxu0 %v1302
  %1513 = vmatmul.mubr.bf16.gmra.mxu0 %v1301
  %v1514 = vpop.f32.mrf.mxu0
  %v1515 = vadd.f32 %v1358, %v1514
  %v1516 = vpop.f32.mrf.mxu0
  %v1517 = vpop.f32.mrf.mxu0
  %v1518 = vadd.f32 %v1358, %v1517
  %v1519 = vpop.f32.mrf.mxu0
  %1520 = vmatprep.mubr.bf16.mxu0 %v1304
  %1521 = vmatmul.mubr.bf16.gmra.mxu0 %v1303
  %v1522 = vpop.f32.mrf.mxu0
  %v1523 = vadd.f32 %v1358, %v1522
  %v1524 = vpop.f32.mrf.mxu0
  %v1525 = vpop.f32.mrf.mxu0
  %v1526 = vadd.f32 %v1358, %v1525
  %v1527 = vpop.f32.mrf.mxu0
  %1528 = vmatprep.mubr.bf16.mxu0 %v1306
  %1529 = vmatmul.mubr.bf16.gmra.mxu0 %v1305
  %v1530 = vpop.f32.mrf.mxu0
  %v1531 = vadd.f32 %v1358, %v1530
  %v1532 = vpop.f32.mrf.mxu0
  %v1533 = vpop.f32.mrf.mxu0
  %v1534 = vadd.f32 %v1358, %v1533
  %v1535 = vpop.f32.mrf.mxu0
  %1536 = vmatprep.mubr.bf16.mxu0 %v1308
  %1537 = vmatmul.mubr.bf16.gmra.mxu0 %v1307
  %v1538 = vpop.f32.mrf.mxu0
  %v1539 = vadd.f32 %v1358, %v1538
  %v1540 = vpop.f32.mrf.mxu0
  %v1541 = vpop.f32.mrf.mxu0
  %v1542 = vadd.f32 %v1358, %v1541
  %v1543 = vpop.f32.mrf.mxu0
  %1544 = vmatprep.mubr.bf16.mxu0 %v1310
  %1545 = vmatmul.mubr.bf16.gmra.mxu0 %v1309
  %v1546 = vpop.f32.mrf.mxu0
  %v1547 = vadd.f32 %v1358, %v1546
  %v1548 = vpop.f32.mrf.mxu0
  %v1549 = vpop.f32.mrf.mxu0
  %v1550 = vadd.f32 %v1358, %v1549
  %v1551 = vpop.f32.mrf.mxu0
  %1552 = vmatprep.mubr.bf16.mxu0 %v1312
  %1553 = vmatmul.mubr.bf16.gmra.mxu0 %v1311
  %v1554 = vpop.f32.mrf.mxu0
  %v1555 = vadd.f32 %v1358, %v1554
  %v1556 = vpop.f32.mrf.mxu0
  %v1557 = vpop.f32.mrf.mxu0
  %v1558 = vadd.f32 %v1358, %v1557
  %v1559 = vpop.f32.mrf.mxu0
  %1560 = vmatprep.mubr.bf16.mxu0 %v1314
  %1561 = vmatmul.mubr.bf16.gmra.mxu0 %v1313
  %v1562 = vpop.f32.mrf.mxu0
  %v1563 = vadd.f32 %v1358, %v1562
  %v1564 = vpop.f32.mrf.mxu0
  %v1565 = vpop.f32.mrf.mxu0
  %v1566 = vadd.f32 %v1358, %v1565
  %v1567 = vpop.f32.mrf.mxu0
  %1568 = vmatprep.mubr.bf16.mxu0 %v1316
  %1569 = vmatmul.mubr.bf16.gmra.mxu0 %v1315
  %v1570 = vpop.f32.mrf.mxu0
  %v1571 = vadd.f32 %v1358, %v1570
  %v1572 = vpop.f32.mrf.mxu0
  %v1573 = vpop.f32.mrf.mxu0
  %v1574 = vadd.f32 %v1358, %v1573
  %v1575 = vpop.f32.mrf.mxu0
  %1576 = vmatprep.mubr.bf16.mxu0 %v1318
  %1577 = vmatmul.mubr.bf16.gmra.mxu0 %v1317
  %v1578 = vpop.f32.mrf.mxu0
  %v1579 = vadd.f32 %v1358, %v1578
  %v1580 = vpop.f32.mrf.mxu0
  %v1581 = vpop.f32.mrf.mxu0
  %v1582 = vadd.f32 %v1358, %v1581
  %v1583 = vpop.f32.mrf.mxu0
  %1584 = vmatprep.mubr.bf16.mxu0 %v1320
  %1585 = vmatmul.mubr.bf16.gmra.mxu0 %v1319
  %v1586 = vpop.f32.mrf.mxu0
  %v1587 = vadd.f32 %v1358, %v1586
  %v1588 = vpop.f32.mrf.mxu0
  %v1589 = vpop.f32.mrf.mxu0
  %v1590 = vpop.f32.mrf.mxu0
  %1591 = vdwg.mxu0
  %1592 = vst [vmem:[%s11] sm:$0xff] %v1491
  %1593 = vst [vmem:[%s11 + $0x8] sm:$0xff] %v1494
  %1594 = vst [vmem:[%s11 + $0x10] sm:$0xff] %v1499
  %1595 = vst [vmem:[%s11 + $0x18] sm:$0xff] %v1502
  %1596 = vst [vmem:[%s11 + $0x20] sm:$0xff] %v1507
  %1597 = vst [vmem:[%s11 + $0x28] sm:$0xff] %v1510
  %1598 = vst [vmem:[%s11 + $0x30] sm:$0xff] %v1515
  %1599 = vst [vmem:[%s11 + $0x38] sm:$0xff] %v1518
  %1600 = vst [vmem:[%s11 + $0x40] sm:$0xff] %v1523
  %1601 = vst [vmem:[%s11 + $0x48] sm:$0xff] %v1526
  %1602 = vst [vmem:[%s11 + $0x50] sm:$0xff] %v1531
  %1603 = vst [vmem:[%s11 + $0x58] sm:$0xff] %v1534
  %1604 = vst [vmem:[%s11 + $0x60] sm:$0xff] %v1539
  %1605 = vst [vmem:[%s11 + $0x68] sm:$0xff] %v1542
  %1606 = vst [vmem:[%s11 + $0x70] sm:$0xff] %v1547
  %1607 = vst [vmem:[%s11 + $0x78] sm:$0xff] %v1550
  %1608 = vst [vmem:[%s11 + $0x80] sm:$0xff] %v1555
  %1609 = vst [vmem:[%s11 + $0x88] sm:$0xff] %v1558
  %1610 = vst [vmem:[%s11 + $0x90] sm:$0xff] %v1563
  %1611 = vst [vmem:[%s11 + $0x98] sm:$0xff] %v1566
  %1612 = vst [vmem:[%s11 + $0xa0] sm:$0xff] %v1571
  %1613 = vst [vmem:[%s11 + $0xa8] sm:$0xff] %v1574
  %1614 = vst [vmem:[%s11 + $0xb0] sm:$0xff] %v1579
  %1615 = vst [vmem:[%s11 + $0xb8] sm:$0xff] %v1582
  %1616 = vst [vmem:[%s11 + $0xc0] sm:$0xff] %v1587
  // Predicated region
  $region46: #{_forward_impl.1} parent=0 // pred_check
    _
  $region47: #{_forward_impl.1} parent=0 // pred_check_branch
    %1618 = sbr.rel (0) target = $region49
  $region48: #{_forward_impl.1} parent=0 // pred_region
    _
  $region49: #{_forward_impl.1} parent=0 // pred_fallthru
    _
  // Predicated region
  $region50: #{_forward_impl.1} parent=0 // pred_check
    _
  $region51: #{_forward_impl.1} parent=0 // pred_check_branch
    %1620 = sbr.rel (0) target = $region53
  $region52: #{_forward_impl.1} parent=0 // pred_region
    _
  $region53: #{_forward_impl.1} parent=0 // pred_fallthru
    _

</llo_original>
